<compile_context>
chip_gen: v7x
topology: tpu7x:2x2x1
jax: 0.10.0
libtpu: 0.0.40
codegen_flags: <defaults>
</compile_context>

<pallas_src>
import functools

import jax
import jax.numpy as jnp
from jax import lax
from jax.experimental import pallas as pl
from jax.experimental.pallas import tpu as pltpu


def _round_up(x, m):
    return ((x + m - 1) // m) * m


def _device_profile():
    """Returns (per-TensorCore VMEM budget in bytes, #TCs a pallas_call grid is split over)."""
    try:
        kind = jax.devices()[0].device_kind.lower()
    except Exception:                                       # pragma: no cover
        kind = ""
    single_tc = any(t in kind for t in ("v5e", "v5 lite", "v5litepod", "v6"))
    if single_tc:
        return 96 * 2 ** 20, 1       # 128 MiB physical VMEM, one TensorCore
    return 48 * 2 ** 20, 2           # v7x (and unknown): 64 MiB / TC, two TCs -> headroom


def _plan_tiles(mout, c_eff, c_out, n_taps, s_max, in_bytes, out_bytes,
                vmem_budget, prefer_steps):
    """Pick the M-tile (lane) width.  tm is a multiple of `unit`; the overlap tail of
    s_pad lanes makes every (kh, kw)-shifted view available inside one VMEM window."""
    unit = 128 if s_max == 0 else _round_up(s_max, 128)
    s_pad = 0 if s_max == 0 else unit
    m_units = -(-mout // unit)
    c8, co8 = _round_up(c_eff, 8), _round_up(c_out, 8)

    def vmem_needed(tm):
        blocks = (2 * c8 * tm * in_bytes                                  # activation tile
                  + 2 * c8 * s_pad * in_bytes                             # overlap tail
                  + 2 * n_taps * co8 * _round_up(c_eff, 128) * in_bytes   # weights (resident)
                  + 2 * co8 * 128 * 4                                     # BN shift (lane-padded)
                  + 2 * co8 * tm * out_bytes)                             # output tile
        scratch = (c8 * (tm + s_pad) * in_bytes                           # concat window
                   + c8 * tm * in_bytes                                   # shifted-slice temp
                   + co8 * tm * 4)                                        # f32 accumulator
        return blocks + 2 * scratch                                       # Mosaic headroom

    steps = max(prefer_steps, -(-mout // 16384), 1)
    while True:
        tm = unit * (-(-m_units // steps))
        if tm == unit or vmem_needed(tm) <= int(0.6 * vmem_budget):
            break
        steps += 1
    m_steps = -(-mout // tm)
    return tm, s_pad, m_steps, vmem_needed(tm)


def _conv_bn_relu_kernel(*refs, offsets, has_tail):
    """out = ReLU( sum_r  W_r @ window[:, off_r : off_r + tm]  +  shift ).

    W_r is tap r (C_out, C_eff) of the BN-scale-folded weight; `window` is the current
    M tile of the channel-major activation slab plus a small lane tail so that every
    (kh, kw)-shifted view is already resident in VMEM (fused im2col)."""
    if has_tail:
        w_ref, x_ref, tail_ref, shift_ref, o_ref = refs
        win = jnp.concatenate([x_ref[...], tail_ref[...]], axis=1)
    else:
        w_ref, x_ref, shift_ref, o_ref = refs
        win = x_ref[...]
    tm = o_ref.shape[1]
    acc = None
    for r, off in enumerate(offsets):
        term = jnp.dot(w_ref[r], win[:, off:off + tm],
                       preferred_element_type=jnp.float32)
        acc = term if acc is None else acc + term
    y = acc + shift_ref[...]                       # folded-BN shift, (C_out, 1) broadcast
    o_ref[...] = jnp.maximum(y, 0.0).astype(o_ref.dtype)


def _conv_as_matmul(w_taps, xt, shift, *, offsets, s_max, mout, compute_dtype, out_dtype):
    """xt: (C_eff, M) channel-major slab; w_taps: (n_taps, C_out, C_eff) -> (C_out, M_pad)."""
    n_taps, c_out, c_eff = w_taps.shape
    vmem_budget, n_tc = _device_profile()
    in_bytes = jnp.dtype(compute_dtype).itemsize
    out_bytes = jnp.dtype(out_dtype).itemsize
    tm, s_pad, m_steps, need = _plan_tiles(mout, c_eff, c_out, n_taps, s_max,
                                           in_bytes, out_bytes, vmem_budget, n_tc)

    m_pad = m_steps * tm + s_pad
    xt = jnp.pad(xt, ((0, 0), (0, m_pad - xt.shape[1]))).astype(compute_dtype)
    w_taps = w_taps.astype(compute_dtype)
    shift = shift.astype(jnp.float32)

    has_tail = s_pad > 0
    kernel = functools.partial(_conv_bn_relu_kernel, offsets=tuple(offsets),
                               has_tail=has_tail)

    in_specs = [
        pl.BlockSpec((n_taps, c_out, c_eff), lambda i: (0, 0, 0)),   # weights, resident
        pl.BlockSpec((c_eff, tm), lambda i: (0, i)),                 # activation M tile
    ]
    operands = [w_taps, xt]
    if has_tail:
        tail_blocks_per_tile = tm // s_pad
        in_specs.append(pl.BlockSpec(
            (c_eff, s_pad), lambda i: (0, (i + 1) * tail_blocks_per_tile)))
        operands.append(xt)                                          # same array, next window
    in_specs.append(pl.BlockSpec((c_out, 1), lambda i: (0, 0)))      # BN shift, resident
    operands.append(shift)

    cost = pl.CostEstimate(
        flops=2 * mout * c_eff * c_out * n_taps,
        transcendentals=0,
        bytes_accessed=int(xt.size * in_bytes + w_taps.size * in_bytes
                           + c_out * m_steps * tm * out_bytes + c_out * 4))

    vmem_limit = int(min(vmem_budget, max(int(1.5 * need), 32 * 2 ** 20)))

    return pl.pallas_call(
        kernel,
        out_shape=jax.ShapeDtypeStruct((c_out, m_steps * tm), out_dtype),
        grid_spec=pltpu.PrefetchScalarGridSpec(
            num_scalar_prefetch=0,
            grid=(m_steps,),
            in_specs=in_specs,
            out_specs=pl.BlockSpec((c_out, tm), lambda i: (0, i)),
        ),
        compiler_params=pltpu.CompilerParams(
            dimension_semantics=("parallel",),
            vmem_limit_bytes=vmem_limit),
        cost_estimate=cost,
    )(*operands)


def _im2col_t(x, kh, kw, stride, padding):
    """(N, C, H, W) -> patches^T (C*KH*KW, N*OH*OW); K ordered C-major then (kh, kw)."""
    n, c, h, w = x.shape
    oh = (h + 2 * padding - kh) // stride + 1
    ow = (w + 2 * padding - kw) // stride + 1
    xp = jnp.pad(x, ((0, 0), (0, 0), (padding, padding), (padding, padding)))
    cols = [xp[:, :, i:i + stride * oh:stride, j:j + stride * ow:stride]
            for i in range(kh) for j in range(kw)]
    p = jnp.stack(cols, axis=2).reshape(n, c * kh * kw, oh, ow)
    return jnp.transpose(p, (1, 0, 2, 3)).reshape(c * kh * kw, n * oh * ow)


@functools.partial(jax.jit, static_argnames=("stride", "padding", "compute_dtype"))
def basic_conv2d(x, weight, gamma, beta, running_mean, running_var, *,
                 stride=1, padding=0, eps=1e-3, compute_dtype=jnp.bfloat16):
    """Forward of BasicConv2d: Conv2d(bias=False) -> BatchNorm2d(eval, eps) -> ReLU.

    x: (N, C_in, H, W) NCHW.  weight: (C_out, C_in, KH, KW).  Inference-mode BN (running
    statistics) is folded into the conv weights (scale) + a per-channel shift in the kernel
    epilogue.  eps defaults to 1e-3 to match the module's BatchNorm2d(eps=0.001)."""
    n, c_in, h, w = x.shape
    c_out, _, kh, kw = weight.shape
    oh = (h + 2 * padding - kh) // stride + 1
    ow = (w + 2 * padding - kw) // stride + 1

    # Fold BN: y = (W * scale) (*) x + shift, then ReLU.
    inv_std = lax.rsqrt(running_var.astype(jnp.float32) + eps)
    scale = gamma.astype(jnp.float32) * inv_std
    shift = (beta.astype(jnp.float32)
             - running_mean.astype(jnp.float32) * scale).reshape(c_out, 1)
    w_f32 = weight.astype(jnp.float32) * scale[:, None, None, None]

    if stride == 1:
        # Fused-im2col path: channel-major flat slab; KH*KW shifted views are taken inside
        # the kernel.  ~1x of the activation crosses HBM (vs. KH*KW x for materialized im2col).
        hp, wp = h + 2 * padding, w + 2 * padding
        xt = jnp.pad(x, ((0, 0), (0, 0), (padding, padding), (padding, padding)))
        xt = jnp.transpose(xt, (1, 0, 2, 3)).reshape(c_in, n * hp * wp)
        w_taps = jnp.transpose(w_f32, (2, 3, 0, 1)).reshape(kh * kw, c_out, c_in)
        offsets = tuple(i * wp + j for i in range(kh) for j in range(kw))
        mout, c_eff, s_max = n * hp * wp, c_in, offsets[-1]
    else:
        # TODO(synk): strided convs still go through a materialized im2col (KH*KW x read
        # amplification); a fused strided-window path is future work.
        xt = _im2col_t(x, kh, kw, stride, padding)              # (C_in*KH*KW, N*OH*OW)
        w_taps = w_f32.reshape(1, c_out, c_in * kh * kw)
        offsets = (0,)
        mout, c_eff, s_max = n * oh * ow, c_in * kh * kw, 0

    # TODO(synk): if C_eff were ever too large for a single VMEM window, a reduction grid
    # axis over C_eff would be needed; not required for BasicConv2d-scale shapes.
    oc = _conv_as_matmul(w_taps, xt, shift, offsets=offsets, s_max=s_max, mout=mout,
                         compute_dtype=compute_dtype, out_dtype=x.dtype)

    if stride == 1:
        y = oc[:, :n * hp * wp].reshape(c_out, n, hp, wp)[:, :, :oh, :ow]
    else:
        y = oc[:, :mout].reshape(c_out, n, oh, ow)
    # NOTE: a consumer that accepts the transposed (C_out, M)/NHWC layout could skip this
    # final transpose and keep the kernel layout end-to-end.
    return jnp.transpose(y, (1, 0, 2, 3))


if __name__ == "__main__":
    # Shapes consistent with the module: batch=2, in_planes=4, out_planes=8,
    # spatial 16x16, kernel_size=3, padding=1 (stride 1 fused path + stride 2 fallback).
    N, C_IN, H, W = 2, 4, 16, 16
    C_OUT, KH, KW = 8, 3, 3
    EPS = 1e-3

    key = jax.random.PRNGKey(0)
    kx, kw_, kg, kb, km, kv = jax.random.split(key, 6)
    x = jax.random.normal(kx, (N, C_IN, H, W), dtype=jnp.float32)
    weight = jax.random.normal(kw_, (C_OUT, C_IN, KH, KW), dtype=jnp.float32) * 0.1
    gamma = jax.random.normal(kg, (C_OUT,), dtype=jnp.float32) * 0.1 + 1.0
    beta = jax.random.normal(kb, (C_OUT,), dtype=jnp.float32) * 0.1
    running_mean = jax.random.normal(km, (C_OUT,), dtype=jnp.float32) * 0.1
    running_var = jax.random.uniform(kv, (C_OUT,), dtype=jnp.float32,
                                     minval=0.5, maxval=1.5)

    def reference(stride, padding):
        y = lax.conv_general_dilated(
            x, weight, window_strides=(stride, stride),
            padding=[(padding, padding), (padding, padding)],
            dimension_numbers=("NCHW", "OIHW", "NCHW"))
        inv_std = lax.rsqrt(running_var + EPS)
        y = y * (gamma * inv_std)[None, :, None, None] + \
            (beta - running_mean * gamma * inv_std)[None, :, None, None]
        return jnp.maximum(y, 0.0)

    # 3x3, stride 1, padding 1 -- fused in-kernel im2col path, f32 operands.
    ref = reference(1, 1)
    out_f32 = jax.block_until_ready(
        basic_conv2d(x, weight, gamma, beta, running_mean, running_var,
                     stride=1, padding=1, eps=EPS, compute_dtype=jnp.float32))
    assert out_f32.shape == (N, C_OUT, H, W), out_f32.shape
    assert jnp.allclose(out_f32, ref, atol=5e-4, rtol=5e-4), \
        float(jnp.max(jnp.abs(out_f32 - ref)))

    # Same conv, bf16 operands (MXU fast path / half DMA bytes), f32 accumulate + epilogue.
    out_bf16 = jax.block_until_ready(
        basic_conv2d(x, weight, gamma, beta, running_mean, running_var,
                     stride=1, padding=1, eps=EPS, compute_dtype=jnp.bfloat16))
    assert out_bf16.shape == (N, C_OUT, H, W), out_bf16.shape
    assert jnp.allclose(out_bf16, ref, atol=4e-2, rtol=4e-2), \
        float(jnp.max(jnp.abs(out_bf16 - ref)))

    # 3x3, stride 2, padding 1 -- materialized-im2col fallback path.
    ref_s2 = reference(2, 1)
    out_s2 = jax.block_until_ready(
        basic_conv2d(x, weight, gamma, beta, running_mean, running_var,
                     stride=2, padding=1, eps=EPS, compute_dtype=jnp.float32))
    assert out_s2.shape == ref_s2.shape, (out_s2.shape, ref_s2.shape)
    assert jnp.allclose(out_s2, ref_s2, atol=5e-4, rtol=5e-4), \
        float(jnp.max(jnp.abs(out_s2 - ref_s2)))

    print("KERNEL_OK")
</pallas_src>

<mosaic_0001>
module attributes {stable_mosaic.version = 11 : i64} {
  func.func @_conv_bn_relu_kernel(%arg0: i32, %arg1: memref<9x8x4xf32, #tpu.memory_space<vmem>>, %arg2: memref<4x384xf32, #tpu.memory_space<vmem>>, %arg3: memref<4x128xf32, #tpu.memory_space<vmem>>, %arg4: memref<8x1xf32, #tpu.memory_space<vmem>>, %arg5: memref<8x384xf32, #tpu.memory_space<vmem>>) attributes {dimension_semantics = [#tpu.dimension_semantics<parallel>], iteration_bounds = array<i64: 2>, scalar_prefetch = 0 : i64, scratch_operands = 0 : i64, tpu.core_type = #tpu.core_type<tc>, window_params = [{pipeline_mode = #tpu.pipeline_mode<synchronous>, transform_indices = @transform_0, window_bounds = array<i64: 9, 8, 4>}, {transform_indices = @transform_1, window_bounds = array<i64: 4, 384>}, {transform_indices = @transform_2, window_bounds = array<i64: 4, 128>}, {pipeline_mode = #tpu.pipeline_mode<synchronous>, transform_indices = @transform_3, window_bounds = array<i64: 8, 1>}, {transform_indices = @transform_4, window_bounds = array<i64: 8, 384>}]} {
    %c0 = arith.constant 0 : index
    %c0_0 = arith.constant 0 : index
    %0 = vector.load %arg2[%c0, %c0_0] : memref<4x384xf32, #tpu.memory_space<vmem>>, vector<4x384xf32>
    %c0_1 = arith.constant 0 : index
    %c0_2 = arith.constant 0 : index
    %1 = vector.load %arg3[%c0_1, %c0_2] : memref<4x128xf32, #tpu.memory_space<vmem>>, vector<4x128xf32>
    %2 = tpu.concatenate %0, %1 in 1 : vector<4x384xf32>, vector<4x128xf32> -> vector<4x512xf32>
    %c0_3 = arith.constant 0 : index
    %c0_4 = arith.constant 0 : index
    %c0_5 = arith.constant 0 : index
    %3 = vector.load %arg1[%c0_3, %c0_4, %c0_5] : memref<9x8x4xf32, #tpu.memory_space<vmem>>, vector<1x8x4xf32>
    %4 = vector.shape_cast %3 : vector<1x8x4xf32> to vector<8x4xf32>
    %5 = vector.extract_strided_slice %2 {offsets = [0, 0], sizes = [4, 384], strides = [1, 1]} : vector<4x512xf32> to vector<4x384xf32>
    %cst = arith.constant dense<0.000000e+00> : vector<8x384xf32>
    %6 = tpu.matmul %4, %5, %cst {dimension_numbers = #tpu.dot_dimension_numbers<[1], [0], [0], [1], [0, 0, 1, 1], [], []>} : vector<8x4xf32>, vector<4x384xf32>, vector<8x384xf32> -> vector<8x384xf32>
    %c1 = arith.constant 1 : index
    %c0_6 = arith.constant 0 : index
    %c0_7 = arith.constant 0 : index
    %7 = vector.load %arg1[%c1, %c0_6, %c0_7] : memref<9x8x4xf32, #tpu.memory_space<vmem>>, vector<1x8x4xf32>
    %8 = vector.shape_cast %7 : vector<1x8x4xf32> to vector<8x4xf32>
    %9 = vector.extract_strided_slice %2 {offsets = [0, 1], sizes = [4, 384], strides = [1, 1]} : vector<4x512xf32> to vector<4x384xf32>
    %cst_8 = arith.constant dense<0.000000e+00> : vector<8x384xf32>
    %10 = tpu.matmul %8, %9, %cst_8 {dimension_numbers = #tpu.dot_dimension_numbers<[1], [0], [0], [1], [0, 0, 1, 1], [], []>} : vector<8x4xf32>, vector<4x384xf32>, vector<8x384xf32> -> vector<8x384xf32>
    %11 = arith.addf %6, %10 : vector<8x384xf32>
    %c2 = arith.constant 2 : index
    %c0_9 = arith.constant 0 : index
    %c0_10 = arith.constant 0 : index
    %12 = vector.load %arg1[%c2, %c0_9, %c0_10] : memref<9x8x4xf32, #tpu.memory_space<vmem>>, vector<1x8x4xf32>
    %13 = vector.shape_cast %12 : vector<1x8x4xf32> to vector<8x4xf32>
    %14 = vector.extract_strided_slice %2 {offsets = [0, 2], sizes = [4, 384], strides = [1, 1]} : vector<4x512xf32> to vector<4x384xf32>
    %cst_11 = arith.constant dense<0.000000e+00> : vector<8x384xf32>
    %15 = tpu.matmul %13, %14, %cst_11 {dimension_numbers = #tpu.dot_dimension_numbers<[1], [0], [0], [1], [0, 0, 1, 1], [], []>} : vector<8x4xf32>, vector<4x384xf32>, vector<8x384xf32> -> vector<8x384xf32>
    %16 = arith.addf %11, %15 : vector<8x384xf32>
    %c3 = arith.constant 3 : index
    %c0_12 = arith.constant 0 : index
    %c0_13 = arith.constant 0 : index
    %17 = vector.load %arg1[%c3, %c0_12, %c0_13] : memref<9x8x4xf32, #tpu.memory_space<vmem>>, vector<1x8x4xf32>
    %18 = vector.shape_cast %17 : vector<1x8x4xf32> to vector<8x4xf32>
    %19 = vector.extract_strided_slice %2 {offsets = [0, 18], sizes = [4, 384], strides = [1, 1]} : vector<4x512xf32> to vector<4x384xf32>
    %cst_14 = arith.constant dense<0.000000e+00> : vector<8x384xf32>
    %20 = tpu.matmul %18, %19, %cst_14 {dimension_numbers = #tpu.dot_dimension_numbers<[1], [0], [0], [1], [0, 0, 1, 1], [], []>} : vector<8x4xf32>, vector<4x384xf32>, vector<8x384xf32> -> vector<8x384xf32>
    %21 = arith.addf %16, %20 : vector<8x384xf32>
    %c4 = arith.constant 4 : index
    %c0_15 = arith.constant 0 : index
    %c0_16 = arith.constant 0 : index
    %22 = vector.load %arg1[%c4, %c0_15, %c0_16] : memref<9x8x4xf32, #tpu.memory_space<vmem>>, vector<1x8x4xf32>
    %23 = vector.shape_cast %22 : vector<1x8x4xf32> to vector<8x4xf32>
    %24 = vector.extract_strided_slice %2 {offsets = [0, 19], sizes = [4, 384], strides = [1, 1]} : vector<4x512xf32> to vector<4x384xf32>
    %cst_17 = arith.constant dense<0.000000e+00> : vector<8x384xf32>
    %25 = tpu.matmul %23, %24, %cst_17 {dimension_numbers = #tpu.dot_dimension_numbers<[1], [0], [0], [1], [0, 0, 1, 1], [], []>} : vector<8x4xf32>, vector<4x384xf32>, vector<8x384xf32> -> vector<8x384xf32>
    %26 = arith.addf %21, %25 : vector<8x384xf32>
    %c5 = arith.constant 5 : index
    %c0_18 = arith.constant 0 : index
    %c0_19 = arith.constant 0 : index
    %27 = vector.load %arg1[%c5, %c0_18, %c0_19] : memref<9x8x4xf32, #tpu.memory_space<vmem>>, vector<1x8x4xf32>
    %28 = vector.shape_cast %27 : vector<1x8x4xf32> to vector<8x4xf32>
    %29 = vector.extract_strided_slice %2 {offsets = [0, 20], sizes = [4, 384], strides = [1, 1]} : vector<4x512xf32> to vector<4x384xf32>
    %cst_20 = arith.constant dense<0.000000e+00> : vector<8x384xf32>
    %30 = tpu.matmul %28, %29, %cst_20 {dimension_numbers = #tpu.dot_dimension_numbers<[1], [0], [0], [1], [0, 0, 1, 1], [], []>} : vector<8x4xf32>, vector<4x384xf32>, vector<8x384xf32> -> vector<8x384xf32>
    %31 = arith.addf %26, %30 : vector<8x384xf32>
    %c6 = arith.constant 6 : index
    %c0_21 = arith.constant 0 : index
    %c0_22 = arith.constant 0 : index
    %32 = vector.load %arg1[%c6, %c0_21, %c0_22] : memref<9x8x4xf32, #tpu.memory_space<vmem>>, vector<1x8x4xf32>
    %33 = vector.shape_cast %32 : vector<1x8x4xf32> to vector<8x4xf32>
    %34 = vector.extract_strided_slice %2 {offsets = [0, 36], sizes = [4, 384], strides = [1, 1]} : vector<4x512xf32> to vector<4x384xf32>
    %cst_23 = arith.constant dense<0.000000e+00> : vector<8x384xf32>
    %35 = tpu.matmul %33, %34, %cst_23 {dimension_numbers = #tpu.dot_dimension_numbers<[1], [0], [0], [1], [0, 0, 1, 1], [], []>} : vector<8x4xf32>, vector<4x384xf32>, vector<8x384xf32> -> vector<8x384xf32>
    %36 = arith.addf %31, %35 : vector<8x384xf32>
    %c7 = arith.constant 7 : index
    %c0_24 = arith.constant 0 : index
    %c0_25 = arith.constant 0 : index
    %37 = vector.load %arg1[%c7, %c0_24, %c0_25] : memref<9x8x4xf32, #tpu.memory_space<vmem>>, vector<1x8x4xf32>
    %38 = vector.shape_cast %37 : vector<1x8x4xf32> to vector<8x4xf32>
    %39 = vector.extract_strided_slice %2 {offsets = [0, 37], sizes = [4, 384], strides = [1, 1]} : vector<4x512xf32> to vector<4x384xf32>
    %cst_26 = arith.constant dense<0.000000e+00> : vector<8x384xf32>
    %40 = tpu.matmul %38, %39, %cst_26 {dimension_numbers = #tpu.dot_dimension_numbers<[1], [0], [0], [1], [0, 0, 1, 1], [], []>} : vector<8x4xf32>, vector<4x384xf32>, vector<8x384xf32> -> vector<8x384xf32>
    %41 = arith.addf %36, %40 : vector<8x384xf32>
    %c8 = arith.constant 8 : index
    %c0_27 = arith.constant 0 : index
    %c0_28 = arith.constant 0 : index
    %42 = vector.load %arg1[%c8, %c0_27, %c0_28] : memref<9x8x4xf32, #tpu.memory_space<vmem>>, vector<1x8x4xf32>
    %43 = vector.shape_cast %42 : vector<1x8x4xf32> to vector<8x4xf32>
    %44 = vector.extract_strided_slice %2 {offsets = [0, 38], sizes = [4, 384], strides = [1, 1]} : vector<4x512xf32> to vector<4x384xf32>
    %cst_29 = arith.constant dense<0.000000e+00> : vector<8x384xf32>
    %45 = tpu.matmul %43, %44, %cst_29 {dimension_numbers = #tpu.dot_dimension_numbers<[1], [0], [0], [1], [0, 0, 1, 1], [], []>} : vector<8x4xf32>, vector<4x384xf32>, vector<8x384xf32> -> vector<8x384xf32>
    %46 = arith.addf %41, %45 : vector<8x384xf32>
    %c0_30 = arith.constant 0 : index
    %c0_31 = arith.constant 0 : index
    %47 = vector.load %arg4[%c0_30, %c0_31] : memref<8x1xf32, #tpu.memory_space<vmem>>, vector<8x1xf32>
    %48 = vector.broadcast %47 : vector<8x1xf32> to vector<8x384xf32>
    %49 = arith.addf %46, %48 : vector<8x384xf32>
    %cst_32 = arith.constant 0.000000e+00 : f32
    %50 = vector.broadcast %cst_32 : f32 to vector<8x384xf32>
    %51 = arith.maximumf %49, %50 : vector<8x384xf32>
    %c0_33 = arith.constant 0 : index
    %c0_34 = arith.constant 0 : index
    %52 = vector.load %arg5[%c0_33, %c0_34] : memref<8x384xf32, #tpu.memory_space<vmem>>, vector<8x384xf32>
    tpu.vector_store %arg5[%c0_33, %c0_34], %51 {strides = array<i32>} : memref<8x384xf32, #tpu.memory_space<vmem>>, vector<8x384xf32>,
    return
  }
  func.func @transform_0(%arg0: i32) -> (i32, i32, i32) {
    %c0_i32 = arith.constant 0 : i32
    %c0_i32_0 = arith.constant 0 : i32
    %c0_i32_1 = arith.constant 0 : i32
    %c0_i32_2 = arith.constant 0 : i32
    return %c0_i32, %c0_i32_0, %c0_i32_1 : i32, i32, i32
  }
  func.func @transform_1(%arg0: i32) -> (i32, i32) {
    %c0_i32 = arith.constant 0 : i32
    %c0_i32_0 = arith.constant 0 : i32
    return %c0_i32, %arg0 : i32, i32
  }
  func.func @transform_2(%arg0: i32) -> (i32, i32) {
    %c1_i32 = arith.constant 1 : i32
    %0 = arith.addi %arg0, %c1_i32 : i32
    %c3_i32 = arith.constant 3 : i32
    %1 = arith.muli %0, %c3_i32 : i32
    %c0_i32 = arith.constant 0 : i32
    %c0_i32_0 = arith.constant 0 : i32
    return %c0_i32, %1 : i32, i32
  }
  func.func @transform_3(%arg0: i32) -> (i32, i32) {
    %c0_i32 = arith.constant 0 : i32
    %c0_i32_0 = arith.constant 0 : i32
    %c0_i32_1 = arith.constant 0 : i32
    return %c0_i32, %c0_i32_0 : i32, i32
  }
  func.func @transform_4(%arg0: i32) -> (i32, i32) {
    %c0_i32 = arith.constant 0 : i32
    %c0_i32_0 = arith.constant 0 : i32
    return %c0_i32, %arg0 : i32, i32
  }
}

</mosaic_0001>

<llo_original>
// kernel: basic_conv2d.1
$region0: #{basic_conv2d.1}
  #allocation0 [shape = 'u32[]', space=smem, size = 0x4, offset = 0x4, fixed_abs, tag = 'smem constant byte address 0x4 - core index']
  #allocation1 [shape = 'u32[144,128]{1,0:T(1,128)}', space=vmem, size = 0x12000, scoped, tag = 'internal scratch']
  %s0 = inlined_call_operand.vmem [shape: f32[9,8,4], index: 0, kind: input, shape index: {}]
  %s1 = inlined_call_operand.vmem [shape: f32[4,896], index: 1, kind: input, shape index: {}, may-alias: {1,2}]
  %s2 = inlined_call_operand.vmem [shape: f32[4,896], index: 2, kind: input, shape index: {}, may-alias: {1,2}]
  %s3 = inlined_call_operand.vmem [shape: f32[8,1], index: 3, kind: input, shape index: {}]
  %s4 = inlined_call_operand.vmem [shape: f32[8,768], index: 4, kind: output, shape index: {}]
  %s5 = sld [smem:[#allocation0]]
  $region49: #{basic_conv2d.1} parent=0
    _
  %s7 = ssub.s32 1, %s5
  %s8 = scalar_select 0, %s7, %s5
  loop: start=0, step=1, limit=4
  $region2: #{basic_conv2d.1} parent=0 // loop_pre_header
    _
  $region3: #{basic_conv2d.1} parent=0 // loop_header
    %s10 = sphi 0, %s14
    %p11 = scmp.ge.s32.totalorder %s10, 4
    %s18 = sphi 0, %s18
    %s20 = sphi 0, %s18
    %s21 = sphi 0, %s20
    %s35 = sphi 0, %s21
    %s41 = sphi 0, %s43
    %s44 = sphi 0, %s41
    %s45 = sphi 0, %s44
    %s61 = sphi 0, %s45
    %s71 = sphi 0, %s73
    %s74 = sphi 0, %s71
    %s75 = sphi 0, %s74
    %s91 = sphi 0, %s75
    %s95 = sphi 0, %s95
    %s97 = sphi 0, %s95
    %s98 = sphi 0, %s97
    %s112 = sphi 0, %s98
    %s118 = sphi 0, %s120
    %s121 = sphi 0, %s118
    %s122 = sphi 0, %s121
    %s138 = sphi 0, %s122
  $region4: #{basic_conv2d.1} parent=0 // loop_header_branch
    %13 = sbr.rel (%p11) target = $region8
  $region5: #{basic_conv2d.1} parent=0 // loop_body
    %s15 = ssub.s32 %s10, 1
    %s16 = ssub.s32 %s10, 2
    %s17 = sadd.s32 %s10, 1
    %s19 = sadd.s32 %s18, 1
    %p22 = scmp.eq.s32.totalorder %s10, 1
    %p23 = scmp.ne.s32.totalorder %s18, %s20
    %p24 = scmp.eq.s32.totalorder %s10, 0
    %p25 = por %p23, %p24
    %p26 = scmp.ne.s32.totalorder %s18, %s20
    %p27 = scmp.eq.s32.totalorder %s15, 1
    %p28 = por %p26, %p27
    %p29 = scmp.ne.s32.totalorder %s20, %s21
    %p30 = scmp.eq.s32.totalorder %s15, 0
    %p31 = por %p29, %p30
    %p32 = scmp.ne.s32.totalorder %s20, %s21
    %p33 = scmp.eq.s32.totalorder %s16, 1
    %p34 = por %p32, %p33
    %p36 = scmp.ne.s32.totalorder %s21, %s35
    %p37 = scmp.eq.s32.totalorder %s16, 0
    %p38 = por %p36, %p37
    %s39 = ssub.s32 %s10, %s17
    %p40 = scmp.eq.s32.totalorder %s39, 0
    %s42 = sadd.s32 %s41, 1
    %s43 = scalar_select %p40, %s41, %s42
    %p46 = pneg %p40
    %p47 = scmp.eq.s32.totalorder %s10, 1
    %p48 = por %p46, %p47
    %p49 = scmp.ne.s32.totalorder %s41, %s44
    %p50 = scmp.eq.s32.totalorder %s10, 0
    %p51 = por %p49, %p50
    %p52 = scmp.ne.s32.totalorder %s41, %s44
    %p53 = scmp.eq.s32.totalorder %s15, 1
    %p54 = por %p52, %p53
    %p55 = scmp.ne.s32.totalorder %s44, %s45
    %p56 = scmp.eq.s32.totalorder %s15, 0
    %p57 = por %p55, %p56
    %p58 = scmp.ne.s32.totalorder %s44, %s45
    %p59 = scmp.eq.s32.totalorder %s16, 1
    %p60 = por %p58, %p59
    %p62 = scmp.ne.s32.totalorder %s45, %s61
    %p63 = scmp.eq.s32.totalorder %s16, 0
    %p64 = por %p62, %p63
    %s65 = sadd.s32 %s10, 1
    %s66 = smul.u32 %s65, 3
    %s67 = sadd.s32 %s17, 1
    %s68 = smul.u32 %s67, 3
    %s69 = ssub.s32 %s66, %s68
    %p70 = scmp.eq.s32.totalorder %s69, 0
    %s72 = sadd.s32 %s71, 1
    %s73 = scalar_select %p70, %s71, %s72
    %p76 = pneg %p70
    %p77 = scmp.eq.s32.totalorder %s10, 1
    %p78 = por %p76, %p77
    %p79 = scmp.ne.s32.totalorder %s71, %s74
    %p80 = scmp.eq.s32.totalorder %s10, 0
    %p81 = por %p79, %p80
    %p82 = scmp.ne.s32.totalorder %s71, %s74
    %p83 = scmp.eq.s32.totalorder %s15, 1
    %p84 = por %p82, %p83
    %p85 = scmp.ne.s32.totalorder %s74, %s75
    %p86 = scmp.eq.s32.totalorder %s15, 0
    %p87 = por %p85, %p86
    %p88 = scmp.ne.s32.totalorder %s74, %s75
    %p89 = scmp.eq.s32.totalorder %s16, 1
    %p90 = por %p88, %p89
    %p92 = scmp.ne.s32.totalorder %s75, %s91
    %p93 = scmp.eq.s32.totalorder %s16, 0
    %p94 = por %p92, %p93
    %s96 = sadd.s32 %s95, 1
    %p99 = scmp.eq.s32.totalorder %s10, 1
    %p100 = scmp.ne.s32.totalorder %s95, %s97
    %p101 = scmp.eq.s32.totalorder %s10, 0
    %p102 = por %p100, %p101
    %p103 = scmp.ne.s32.totalorder %s95, %s97
    %p104 = scmp.eq.s32.totalorder %s15, 1
    %p105 = por %p103, %p104
    %p106 = scmp.ne.s32.totalorder %s97, %s98
    %p107 = scmp.eq.s32.totalorder %s15, 0
    %p108 = por %p106, %p107
    %p109 = scmp.ne.s32.totalorder %s97, %s98
    %p110 = scmp.eq.s32.totalorder %s16, 1
    %p111 = por %p109, %p110
    %p113 = scmp.ne.s32.totalorder %s98, %s112
    %p114 = scmp.eq.s32.totalorder %s16, 0
    %p115 = por %p113, %p114
    %s116 = ssub.s32 %s10, %s17
    %p117 = scmp.eq.s32.totalorder %s116, 0
    %s119 = sadd.s32 %s118, 1
    %s120 = scalar_select %p117, %s118, %s119
    %p123 = pneg %p117
    %p124 = scmp.eq.s32.totalorder %s10, 1
    %p125 = por %p123, %p124
    %p126 = scmp.ne.s32.totalorder %s118, %s121
    %p127 = scmp.eq.s32.totalorder %s10, 0
    %p128 = por %p126, %p127
    %p129 = scmp.ne.s32.totalorder %s118, %s121
    %p130 = scmp.eq.s32.totalorder %s15, 1
    %p131 = por %p129, %p130
    %p132 = scmp.ne.s32.totalorder %s121, %s122
    %p133 = scmp.eq.s32.totalorder %s15, 0
    %p134 = por %p132, %p133
    %p135 = scmp.ne.s32.totalorder %s121, %s122
    %p136 = scmp.eq.s32.totalorder %s16, 1
    %p137 = por %p135, %p136
    %p139 = scmp.ne.s32.totalorder %s122, %s138
    %p140 = scmp.eq.s32.totalorder %s16, 0
    %p141 = por %p139, %p140
    %p142 = scmp.le.s32.totalorder 1, %s10
    %p143 = scmp.lt.s32.totalorder %s10, 3
    %p144 = pnand %p142, %p143
    %p145 = pneg %p144
    // Predicated region
    $region9: #{basic_conv2d.1} parent=5 // pred_check
      _
    $region10: #{basic_conv2d.1} parent=5 // pred_check_branch
      %147 = sbr.rel (%p144) target = $region12
    $region11: #{basic_conv2d.1} parent=5 // pred_region
      %s148 = ssub.s32 %s10, 1
      // Predicated region
      $region13: #{basic_conv2d.1} parent=11 // pred_check
        %p149 = pneg %p31
      $region14: #{basic_conv2d.1} parent=11 // pred_check_branch
        %151 = sbr.rel (%p149) target = $region16
      $region15: #{basic_conv2d.1} parent=11 // pred_region
        _
      $region16: #{basic_conv2d.1} parent=11 // pred_fallthru
        _
      // Predicated region
      $region17: #{basic_conv2d.1} parent=11 // pred_check
        %p152 = pneg %p108
      $region18: #{basic_conv2d.1} parent=11 // pred_check_branch
        %154 = sbr.rel (%p152) target = $region20
      $region19: #{basic_conv2d.1} parent=11 // pred_region
        _
      $region20: #{basic_conv2d.1} parent=11 // pred_fallthru
        _
    $region12: #{basic_conv2d.1} parent=5 // pred_fallthru
      _
    %p155 = scmp.lt.s32.totalorder %s10, 2
    // Predicated region
    $region21: #{basic_conv2d.1} parent=5 // pred_check
      %p156 = pneg %p155
    $region22: #{basic_conv2d.1} parent=5 // pred_check_branch
      %158 = sbr.rel (%p156) target = $region24
    $region23: #{basic_conv2d.1} parent=5 // pred_region
      // Predicated region
      $region25: #{basic_conv2d.1} parent=23 // pred_check
        %p159 = pneg %p51
      $region26: #{basic_conv2d.1} parent=23 // pred_check_branch
        %161 = sbr.rel (%p159) target = $region28
      $region27: #{basic_conv2d.1} parent=23 // pred_region
        %s162 = smul.u32 3, %s10
        %s163 = ssub.s32 7, %s162
        %p164 = scmp.lt.s32.totalorder %s163, 3
        %s165 = scalar_select %p164, %s163, 3
        %s166 = smul.u32 64, %s165
        %p167 = scmp.lt.s32.totalorder %s162, 6
        %s168 = scalar_select %p167, %s162, 6
        %s169 = smul.addr %s168, 4
        %s170 = scalar_lea.vmem %s1, %s169
        %s171 = smul.u32 3, %s10
        %s172 = ssub.s32 7, %s171
        %p173 = scmp.lt.s32.totalorder %s172, 3
        %s174 = scalar_select %p173, %s172, 3
        %s175 = smul.u32 64, %s174
      $region28: #{basic_conv2d.1} parent=23 // pred_fallthru
        _
      // Predicated region
      $region29: #{basic_conv2d.1} parent=23 // pred_check
        %p176 = pneg %p81
      $region30: #{basic_conv2d.1} parent=23 // pred_check_branch
        %178 = sbr.rel (%p176) target = $region32
      $region31: #{basic_conv2d.1} parent=23 // pred_region
        %s179 = sadd.s32 %s10, 1
        %s180 = smul.u32 %s179, 3
        %p181 = scmp.lt.s32.totalorder %s180, 6
        %s182 = scalar_select %p181, %s180, 6
        %s183 = smul.addr %s182, 4
        %s184 = scalar_lea.vmem %s2, %s183
        %s185 = sadd.s32 %s10, 1
        %s186 = smul.u32 %s185, 3
      $region32: #{basic_conv2d.1} parent=23 // pred_fallthru
        _
    $region24: #{basic_conv2d.1} parent=5 // pred_fallthru
      _
    %p187 = scmp.le.s32.totalorder 1, %s10
    %p188 = scmp.lt.s32.totalorder %s10, 3
    %p189 = pnand %p187, %p188
    %p190 = pneg %p189
    // Predicated region
    $region33: #{basic_conv2d.1} parent=5 // pred_check
      _
    $region34: #{basic_conv2d.1} parent=5 // pred_check_branch
      %192 = sbr.rel (%p189) target = $region36
    $region35: #{basic_conv2d.1} parent=5 // pred_region
      %s193 = ssub.s32 %s10, 1
      %p194 = pneg %p31
      %p195 = pneg %p28
      %s196 = smul.u32 3, %s15
      %s197 = ssub.s32 7, %s196
      %p198 = scmp.lt.s32.totalorder %s197, 3
      %s199 = scalar_select %p198, %s197, 3
      %s200 = smul.u32 64, %s199
      %p201 = scmp.lt.s32.totalorder %s196, 6
      %s202 = scalar_select %p201, %s196, 6
      %s203 = smul.addr %s202, 4
      %s204 = scalar_lea.vmem %s1, %s203
      %p205 = pneg %p57
      %p206 = pneg %p54
      %s207 = sadd.s32 %s15, 1
      %s208 = smul.u32 %s207, 3
      %p209 = scmp.lt.s32.totalorder %s208, 6
      %s210 = scalar_select %p209, %s208, 6
      %s211 = smul.addr %s210, 4
      %s212 = scalar_lea.vmem %s2, %s211
      %p213 = pneg %p87
      %p214 = pneg %p84
      %p215 = pneg %p108
      %p216 = pneg %p105
      %p217 = pneg %p134
      %p218 = pneg %p131
      %s219 = smul.u32 3, %s15
      %p220 = scmp.lt.s32.totalorder %s219, 5
      %s221 = scalar_select %p220, %s219, 5
      %s222 = smul.addr %s221, 8
      %s223 = scalar_lea.vmem %s4, %s222
      %s224 = smul.u32 3, %s15
      %s225 = ssub.s32 7, %s224
      %p226 = scmp.lt.s32.totalorder %s225, 3
      %s227 = scalar_select %p226, %s225, 3
      %s228 = smul.u32 64, %s227
      %p229 = scmp.lt.s32.totalorder %s224, 6
      %s230 = scalar_select %p229, %s224, 6
      %s231 = smul.addr %s230, 4
      %s232 = scalar_lea.vmem %s1, %s231
      %s233 = smul.u32 3, %s15
      %s234 = ssub.s32 7, %s233
      %p235 = scmp.lt.s32.totalorder %s234, 3
      %s236 = scalar_select %p235, %s234, 3
      %s237 = smul.u32 64, %s236
      %s238 = sadd.s32 %s15, 1
      %s239 = smul.u32 %s238, 3
      %p240 = scmp.lt.s32.totalorder %s239, 6
      %s241 = scalar_select %p240, %s239, 6
      %s242 = smul.addr %s241, 4
      %s243 = scalar_lea.vmem %s2, %s242
      %s244 = sadd.s32 %s15, 1
      %s245 = smul.u32 %s244, 3
      %s246 = smul.u32 3, %s15
      %p247 = scmp.lt.s32.totalorder %s246, 5
      %s248 = scalar_select %p247, %s246, 5
      %s249 = smul.addr %s248, 8
      %s250 = scalar_lea.vmem %s4, %s249
      %s251 = smul.u32 3, %s15
      %v252 = vld [vmem:[%s232] sm:$0xff]
      %v253 = vld [vmem:[%s232 + $0x8] sm:$0xf]
      %v254 = vld [vmem:[%s243] sm:$0xf]
      %v257 = vcombine.high %v252, %v252
      %v258 = vld [vmem:[%s0] sm:$0xff]
      %s259 = scalar_lea.vmem %s0, 8
      %v260 = vld [vmem:[%s259] sm:$0xff]
      %262 = vrot.lane.b32.xlu0 %v252, 127
      %v263 = vpop.permute.xlu0 %262
      %264 = vrot.lane.b32.xlu0 %v257, 127
      %v265 = vpop.permute.xlu0 %264
      %266 = vrot.lane.b32.xlu0 %v253, 127
      %v267 = vpop.permute.xlu0 %266
      %268 = vrot.lane.b32.xlu0 %v254, 127
      %v269 = vpop.permute.xlu0 %268
      %vm270 = vcmask 1039360
      %v271 = vsel %vm270, %v263, %v265
      %v272 = vsel %vm270, %v265, %v267
      %v273 = vsel %vm270, %v267, %v269
      %vm274 = vcmask 31744
      %v276 = vsel %vm274, %v260, 0
      %vm278 = vcmask 1043456
      %v279 = vsel %vm278, %v271, 0
      %v281 = vsel %vm278, %v272, 0
      %v283 = vsel %vm278, %v273, 0
      %285 = vmatprep.subr.mxu0 %v281
      %286 = vmatpush1.msra.mxu0 %v279
      %287 = vmatprep.subr.mxu0 0.0
      %288 = vmatpush1.msra.mxu0 0.0
      %289 = vmatprep.subr.mxu0 0.0
      %290 = vmatpush1.msra.mxu0 0.0
      %291 = vmatprep.subr.mxu0 0.0
      %292 = vmatpush1.msra.mxu0 0.0
      %293 = vmatprep.subr.mxu0 0.0
      %294 = vmatpush1.msra.mxu0 0.0
      %295 = vmatprep.subr.mxu0 0.0
      %296 = vmatpush1.msra.mxu0 0.0
      %297 = vmatprep.subr.mxu0 0.0
      %298 = vmatpush1.msra.mxu0 0.0
      %299 = vmatprep.subr.mxu0 0.0
      %300 = vmatpush1.msra.mxu0 0.0
      %301 = vmatprep.subr.mxu0 0.0
      %302 = vmatpush1.msra.mxu0 0.0
      %303 = vmatprep.subr.mxu0 0.0
      %304 = vmatpush1.msra.mxu0 0.0
      %305 = vmatprep.subr.mxu0 0.0
      %306 = vmatpush1.msra.mxu0 0.0
      %307 = vmatprep.subr.mxu0 0.0
      %308 = vmatpush1.msra.mxu0 0.0
      %309 = vmatprep.subr.mxu0 0.0
      %310 = vmatpush1.msra.mxu0 0.0
      %311 = vmatprep.subr.mxu0 0.0
      %312 = vmatpush1.msra.mxu0 0.0
      %313 = vmatprep.subr.mxu0 0.0
      %314 = vmatpush1.msra.mxu0 0.0
      %315 = vmatprep.subr.mxu0 0.0
      %316 = vmatpush1.msra.mxu0 0.0
      %317 = vmatprep.subr.mxu0 0.0
      %318 = vmatpush1.msra.mxu0 0.0
      %319 = vmatprep.subr.mxu0 0.0
      %320 = vmatpush1.msra.mxu0 0.0
      %321 = vmatprep.subr.mxu0 0.0
      %322 = vmatpush1.msra.mxu0 0.0
      %323 = vmatprep.subr.mxu0 0.0
      %324 = vmatpush1.msra.mxu0 0.0
      %325 = vmatprep.subr.mxu0 0.0
      %326 = vmatpush1.msra.mxu0 0.0
      %327 = vmatprep.subr.mxu0 0.0
      %328 = vmatpush1.msra.mxu0 0.0
      %329 = vmatprep.subr.mxu0 0.0
      %330 = vmatpush1.msra.mxu0 0.0
      %331 = vmatprep.subr.mxu0 0.0
      %332 = vmatpush1.msra.mxu0 0.0
      %333 = vmatprep.subr.mxu0 0.0
      %334 = vmatpush1.msra.mxu0 0.0
      %335 = vmatprep.subr.mxu0 0.0
      %336 = vmatpush1.msra.mxu0 0.0
      %337 = vmatprep.subr.mxu0 0.0
      %338 = vmatpush1.msra.mxu0 0.0
      %339 = vmatprep.subr.mxu0 0.0
      %340 = vmatpush1.msra.mxu0 0.0
      %341 = vmatprep.subr.mxu0 0.0
      %342 = vmatpush1.msra.mxu0 0.0
      %343 = vmatprep.subr.mxu0 0.0
      %344 = vmatpush1.msra.mxu0 0.0
      %345 = vmatprep.subr.mxu0 0.0
      %346 = vmatpush1.msra.mxu0 0.0
      %347 = vmatprep.subr.mxu0 0.0
      %348 = vmatpush1.msra.mxu0 0.0
      %349 = vmatprep.mubr.f32.mxu0 0.0
      %350 = vmatmul.mubr.f32.gmra.mrb[0].mxu0 %v276
      %v351 = vpop.f32.mrb[0].mxu0
      %v352 = vadd.f32 0.0, %v351
      %v353 = vpop.f32.mrb[0].mxu0
      %v354 = vadd.f32 0.0, %v353
      %355 = vdwg.mxu0
      %356 = vmatprep.subr.mxu0 0.0
      %357 = vmatpush1.msra.mxu0 %v283
      %358 = vmatprep.subr.mxu0 0.0
      %359 = vmatpush1.msra.mxu0 0.0
      %360 = vmatprep.subr.mxu0 0.0
      %361 = vmatpush1.msra.mxu0 0.0
      %362 = vmatprep.subr.mxu0 0.0
      %363 = vmatpush1.msra.mxu0 0.0
      %364 = vmatprep.subr.mxu0 0.0
      %365 = vmatpush1.msra.mxu0 0.0
      %366 = vmatprep.subr.mxu0 0.0
      %367 = vmatpush1.msra.mxu0 0.0
      %368 = vmatprep.subr.mxu0 0.0
      %369 = vmatpush1.msra.mxu0 0.0
      %370 = vmatprep.subr.mxu0 0.0
      %371 = vmatpush1.msra.mxu0 0.0
      %372 = vmatprep.subr.mxu0 0.0
      %373 = vmatpush1.msra.mxu0 0.0
      %374 = vmatprep.subr.mxu0 0.0
      %375 = vmatpush1.msra.mxu0 0.0
      %376 = vmatprep.subr.mxu0 0.0
      %377 = vmatpush1.msra.mxu0 0.0
      %378 = vmatprep.subr.mxu0 0.0
      %379 = vmatpush1.msra.mxu0 0.0
      %380 = vmatprep.subr.mxu0 0.0
      %381 = vmatpush1.msra.mxu0 0.0
      %382 = vmatprep.subr.mxu0 0.0
      %383 = vmatpush1.msra.mxu0 0.0
      %384 = vmatprep.subr.mxu0 0.0
      %385 = vmatpush1.msra.mxu0 0.0
      %386 = vmatprep.subr.mxu0 0.0
      %387 = vmatpush1.msra.mxu0 0.0
      %388 = vmatprep.subr.mxu0 0.0
      %389 = vmatpush1.msra.mxu0 0.0
      %390 = vmatprep.subr.mxu0 0.0
      %391 = vmatpush1.msra.mxu0 0.0
      %392 = vmatprep.subr.mxu0 0.0
      %393 = vmatpush1.msra.mxu0 0.0
      %394 = vmatprep.subr.mxu0 0.0
      %395 = vmatpush1.msra.mxu0 0.0
      %396 = vmatprep.subr.mxu0 0.0
      %397 = vmatpush1.msra.mxu0 0.0
      %398 = vmatprep.subr.mxu0 0.0
      %399 = vmatpush1.msra.mxu0 0.0
      %400 = vmatprep.subr.mxu0 0.0
      %401 = vmatpush1.msra.mxu0 0.0
      %402 = vmatprep.subr.mxu0 0.0
      %403 = vmatpush1.msra.mxu0 0.0
      %404 = vmatprep.subr.mxu0 0.0
      %405 = vmatpush1.msra.mxu0 0.0
      %406 = vmatprep.subr.mxu0 0.0
      %407 = vmatpush1.msra.mxu0 0.0
      %408 = vmatprep.subr.mxu0 0.0
      %409 = vmatpush1.msra.mxu0 0.0
      %410 = vmatprep.subr.mxu0 0.0
      %411 = vmatpush1.msra.mxu0 0.0
      %412 = vmatprep.subr.mxu0 0.0
      %413 = vmatpush1.msra.mxu0 0.0
      %414 = vmatprep.subr.mxu0 0.0
      %415 = vmatpush1.msra.mxu0 0.0
      %416 = vmatprep.subr.mxu0 0.0
      %417 = vmatpush1.msra.mxu0 0.0
      %418 = vmatprep.subr.mxu0 0.0
      %419 = vmatpush1.msra.mxu0 0.0
      %420 = vmatprep.mubr.f32.mxu0 0.0
      %421 = vmatmul.mubr.f32.gmra.mrb[0].mxu0 %v276
      %v422 = vpop.f32.mrb[0].mxu0
      %v423 = vadd.f32 0.0, %v422
      %v424 = vpop.f32.mrb[0].mxu0
      %425 = vdwg.mxu0
      %v427 = vsel %vm274, %v258, 0
      %v429 = vsel %vm278, %v252, 0
      %v431 = vsel %vm278, %v257, 0
      %v433 = vsel %vm278, %v253, 0
      %435 = vmatprep.subr.mxu0 %v431
      %436 = vmatpush1.msra.mxu0 %v429
      %437 = vmatprep.subr.mxu0 0.0
      %438 = vmatpush1.msra.mxu0 0.0
      %439 = vmatprep.subr.mxu0 0.0
      %440 = vmatpush1.msra.mxu0 0.0
      %441 = vmatprep.subr.mxu0 0.0
      %442 = vmatpush1.msra.mxu0 0.0
      %443 = vmatprep.subr.mxu0 0.0
      %444 = vmatpush1.msra.mxu0 0.0
      %445 = vmatprep.subr.mxu0 0.0
      %446 = vmatpush1.msra.mxu0 0.0
      %447 = vmatprep.subr.mxu0 0.0
      %448 = vmatpush1.msra.mxu0 0.0
      %449 = vmatprep.subr.mxu0 0.0
      %450 = vmatpush1.msra.mxu0 0.0
      %451 = vmatprep.subr.mxu0 0.0
      %452 = vmatpush1.msra.mxu0 0.0
      %453 = vmatprep.subr.mxu0 0.0
      %454 = vmatpush1.msra.mxu0 0.0
      %455 = vmatprep.subr.mxu0 0.0
      %456 = vmatpush1.msra.mxu0 0.0
      %457 = vmatprep.subr.mxu0 0.0
      %458 = vmatpush1.msra.mxu0 0.0
      %459 = vmatprep.subr.mxu0 0.0
      %460 = vmatpush1.msra.mxu0 0.0
      %461 = vmatprep.subr.mxu0 0.0
      %462 = vmatpush1.msra.mxu0 0.0
      %463 = vmatprep.subr.mxu0 0.0
      %464 = vmatpush1.msra.mxu0 0.0
      %465 = vmatprep.subr.mxu0 0.0
      %466 = vmatpush1.msra.mxu0 0.0
      %467 = vmatprep.subr.mxu0 0.0
      %468 = vmatpush1.msra.mxu0 0.0
      %469 = vmatprep.subr.mxu0 0.0
      %470 = vmatpush1.msra.mxu0 0.0
      %471 = vmatprep.subr.mxu0 0.0
      %472 = vmatpush1.msra.mxu0 0.0
      %473 = vmatprep.subr.mxu0 0.0
      %474 = vmatpush1.msra.mxu0 0.0
      %475 = vmatprep.subr.mxu0 0.0
      %476 = vmatpush1.msra.mxu0 0.0
      %477 = vmatprep.subr.mxu0 0.0
      %478 = vmatpush1.msra.mxu0 0.0
      %479 = vmatprep.subr.mxu0 0.0
      %480 = vmatpush1.msra.mxu0 0.0
      %481 = vmatprep.subr.mxu0 0.0
      %482 = vmatpush1.msra.mxu0 0.0
      %483 = vmatprep.subr.mxu0 0.0
      %484 = vmatpush1.msra.mxu0 0.0
      %485 = vmatprep.subr.mxu0 0.0
      %486 = vmatpush1.msra.mxu0 0.0
      %487 = vmatprep.subr.mxu0 0.0
      %488 = vmatpush1.msra.mxu0 0.0
      %489 = vmatprep.subr.mxu0 0.0
      %490 = vmatpush1.msra.mxu0 0.0
      %491 = vmatprep.subr.mxu0 0.0
      %492 = vmatpush1.msra.mxu0 0.0
      %493 = vmatprep.subr.mxu0 0.0
      %494 = vmatpush1.msra.mxu0 0.0
      %495 = vmatprep.subr.mxu0 0.0
      %496 = vmatpush1.msra.mxu0 0.0
      %497 = vmatprep.subr.mxu0 0.0
      %498 = vmatpush1.msra.mxu0 0.0
      %499 = vmatprep.mubr.f32.mxu0 0.0
      %500 = vmatmul.mubr.f32.gmra.mrb[0].mxu0 %v427
      %v501 = vpop.f32.mrb[0].mxu0
      %v502 = vadd.f32 %v352, %v501
      %v503 = vpop.f32.mrb[0].mxu0
      %v504 = vadd.f32 %v354, %v503
      %505 = vdwg.mxu0
      %506 = vmatprep.subr.mxu0 0.0
      %507 = vmatpush1.msra.mxu0 %v433
      %508 = vmatprep.subr.mxu0 0.0
      %509 = vmatpush1.msra.mxu0 0.0
      %510 = vmatprep.subr.mxu0 0.0
      %511 = vmatpush1.msra.mxu0 0.0
      %512 = vmatprep.subr.mxu0 0.0
      %513 = vmatpush1.msra.mxu0 0.0
      %514 = vmatprep.subr.mxu0 0.0
      %515 = vmatpush1.msra.mxu0 0.0
      %516 = vmatprep.subr.mxu0 0.0
      %517 = vmatpush1.msra.mxu0 0.0
      %518 = vmatprep.subr.mxu0 0.0
      %519 = vmatpush1.msra.mxu0 0.0
      %520 = vmatprep.subr.mxu0 0.0
      %521 = vmatpush1.msra.mxu0 0.0
      %522 = vmatprep.subr.mxu0 0.0
      %523 = vmatpush1.msra.mxu0 0.0
      %524 = vmatprep.subr.mxu0 0.0
      %525 = vmatpush1.msra.mxu0 0.0
      %526 = vmatprep.subr.mxu0 0.0
      %527 = vmatpush1.msra.mxu0 0.0
      %528 = vmatprep.subr.mxu0 0.0
      %529 = vmatpush1.msra.mxu0 0.0
      %530 = vmatprep.subr.mxu0 0.0
      %531 = vmatpush1.msra.mxu0 0.0
      %532 = vmatprep.subr.mxu0 0.0
      %533 = vmatpush1.msra.mxu0 0.0
      %534 = vmatprep.subr.mxu0 0.0
      %535 = vmatpush1.msra.mxu0 0.0
      %536 = vmatprep.subr.mxu0 0.0
      %537 = vmatpush1.msra.mxu0 0.0
      %538 = vmatprep.subr.mxu0 0.0
      %539 = vmatpush1.msra.mxu0 0.0
      %540 = vmatprep.subr.mxu0 0.0
      %541 = vmatpush1.msra.mxu0 0.0
      %542 = vmatprep.subr.mxu0 0.0
      %543 = vmatpush1.msra.mxu0 0.0
      %544 = vmatprep.subr.mxu0 0.0
      %545 = vmatpush1.msra.mxu0 0.0
      %546 = vmatprep.subr.mxu0 0.0
      %547 = vmatpush1.msra.mxu0 0.0
      %548 = vmatprep.subr.mxu0 0.0
      %549 = vmatpush1.msra.mxu0 0.0
      %550 = vmatprep.subr.mxu0 0.0
      %551 = vmatpush1.msra.mxu0 0.0
      %552 = vmatprep.subr.mxu0 0.0
      %553 = vmatpush1.msra.mxu0 0.0
      %554 = vmatprep.subr.mxu0 0.0
      %555 = vmatpush1.msra.mxu0 0.0
      %556 = vmatprep.subr.mxu0 0.0
      %557 = vmatpush1.msra.mxu0 0.0
      %558 = vmatprep.subr.mxu0 0.0
      %559 = vmatpush1.msra.mxu0 0.0
      %560 = vmatprep.subr.mxu0 0.0
      %561 = vmatpush1.msra.mxu0 0.0
      %562 = vmatprep.subr.mxu0 0.0
      %563 = vmatpush1.msra.mxu0 0.0
      %564 = vmatprep.subr.mxu0 0.0
      %565 = vmatpush1.msra.mxu0 0.0
      %566 = vmatprep.subr.mxu0 0.0
      %567 = vmatpush1.msra.mxu0 0.0
      %568 = vmatprep.subr.mxu0 0.0
      %569 = vmatpush1.msra.mxu0 0.0
      %570 = vmatprep.mubr.f32.mxu0 0.0
      %571 = vmatmul.mubr.f32.gmra.mrb[0].mxu0 %v427
      %v572 = vpop.f32.mrb[0].mxu0
      %v573 = vadd.f32 %v423, %v572
      %v574 = vpop.f32.mrb[0].mxu0
      %575 = vdwg.mxu0
      %s576 = scalar_lea.vmem %s0, 16
      %v577 = vld [vmem:[%s576] sm:$0xff]
      %578 = vrot.lane.b32.xlu0 %v252, 126
      %v579 = vpop.permute.xlu0 %578
      %580 = vrot.lane.b32.xlu0 %v257, 126
      %v581 = vpop.permute.xlu0 %580
      %582 = vrot.lane.b32.xlu0 %v253, 126
      %v583 = vpop.permute.xlu0 %582
      %584 = vrot.lane.b32.xlu0 %v254, 126
      %v585 = vpop.permute.xlu0 %584
      %vm586 = vcmask 1031168
      %v587 = vsel %vm586, %v579, %v581
      %v588 = vsel %vm586, %v581, %v583
      %v589 = vsel %vm586, %v583, %v585
      %v591 = vsel %vm274, %v577, 0
      %v593 = vsel %vm278, %v587, 0
      %v595 = vsel %vm278, %v588, 0
      %v597 = vsel %vm278, %v589, 0
      %599 = vmatprep.subr.mxu0 %v595
      %600 = vmatpush1.msra.mxu0 %v593
      %601 = vmatprep.subr.mxu0 0.0
      %602 = vmatpush1.msra.mxu0 0.0
      %603 = vmatprep.subr.mxu0 0.0
      %604 = vmatpush1.msra.mxu0 0.0
      %605 = vmatprep.subr.mxu0 0.0
      %606 = vmatpush1.msra.mxu0 0.0
      %607 = vmatprep.subr.mxu0 0.0
      %608 = vmatpush1.msra.mxu0 0.0
      %609 = vmatprep.subr.mxu0 0.0
      %610 = vmatpush1.msra.mxu0 0.0
      %611 = vmatprep.subr.mxu0 0.0
      %612 = vmatpush1.msra.mxu0 0.0
      %613 = vmatprep.subr.mxu0 0.0
      %614 = vmatpush1.msra.mxu0 0.0
      %615 = vmatprep.subr.mxu0 0.0
      %616 = vmatpush1.msra.mxu0 0.0
      %617 = vmatprep.subr.mxu0 0.0
      %618 = vmatpush1.msra.mxu0 0.0
      %619 = vmatprep.subr.mxu0 0.0
      %620 = vmatpush1.msra.mxu0 0.0
      %621 = vmatprep.subr.mxu0 0.0
      %622 = vmatpush1.msra.mxu0 0.0
      %623 = vmatprep.subr.mxu0 0.0
      %624 = vmatpush1.msra.mxu0 0.0
      %625 = vmatprep.subr.mxu0 0.0
      %626 = vmatpush1.msra.mxu0 0.0
      %627 = vmatprep.subr.mxu0 0.0
      %628 = vmatpush1.msra.mxu0 0.0
      %629 = vmatprep.subr.mxu0 0.0
      %630 = vmatpush1.msra.mxu0 0.0
      %631 = vmatprep.subr.mxu0 0.0
      %632 = vmatpush1.msra.mxu0 0.0
      %633 = vmatprep.subr.mxu0 0.0
      %634 = vmatpush1.msra.mxu0 0.0
      %635 = vmatprep.subr.mxu0 0.0
      %636 = vmatpush1.msra.mxu0 0.0
      %637 = vmatprep.subr.mxu0 0.0
      %638 = vmatpush1.msra.mxu0 0.0
      %639 = vmatprep.subr.mxu0 0.0
      %640 = vmatpush1.msra.mxu0 0.0
      %641 = vmatprep.subr.mxu0 0.0
      %642 = vmatpush1.msra.mxu0 0.0
      %643 = vmatprep.subr.mxu0 0.0
      %644 = vmatpush1.msra.mxu0 0.0
      %645 = vmatprep.subr.mxu0 0.0
      %646 = vmatpush1.msra.mxu0 0.0
      %647 = vmatprep.subr.mxu0 0.0
      %648 = vmatpush1.msra.mxu0 0.0
      %649 = vmatprep.subr.mxu0 0.0
      %650 = vmatpush1.msra.mxu0 0.0
      %651 = vmatprep.subr.mxu0 0.0
      %652 = vmatpush1.msra.mxu0 0.0
      %653 = vmatprep.subr.mxu0 0.0
      %654 = vmatpush1.msra.mxu0 0.0
      %655 = vmatprep.subr.mxu0 0.0
      %656 = vmatpush1.msra.mxu0 0.0
      %657 = vmatprep.subr.mxu0 0.0
      %658 = vmatpush1.msra.mxu0 0.0
      %659 = vmatprep.subr.mxu0 0.0
      %660 = vmatpush1.msra.mxu0 0.0
      %661 = vmatprep.subr.mxu0 0.0
      %662 = vmatpush1.msra.mxu0 0.0
      %663 = vmatprep.mubr.f32.mxu0 0.0
      %664 = vmatmul.mubr.f32.gmra.mrb[0].mxu0 %v591
      %v665 = vpop.f32.mrb[0].mxu0
      %v666 = vadd.f32 0.0, %v665
      %v667 = vpop.f32.mrb[0].mxu0
      %v668 = vadd.f32 0.0, %v667
      %669 = vdwg.mxu0
      %670 = vmatprep.subr.mxu0 0.0
      %671 = vmatpush1.msra.mxu0 %v597
      %672 = vmatprep.subr.mxu0 0.0
      %673 = vmatpush1.msra.mxu0 0.0
      %674 = vmatprep.subr.mxu0 0.0
      %675 = vmatpush1.msra.mxu0 0.0
      %676 = vmatprep.subr.mxu0 0.0
      %677 = vmatpush1.msra.mxu0 0.0
      %678 = vmatprep.subr.mxu0 0.0
      %679 = vmatpush1.msra.mxu0 0.0
      %680 = vmatprep.subr.mxu0 0.0
      %681 = vmatpush1.msra.mxu0 0.0
      %682 = vmatprep.subr.mxu0 0.0
      %683 = vmatpush1.msra.mxu0 0.0
      %684 = vmatprep.subr.mxu0 0.0
      %685 = vmatpush1.msra.mxu0 0.0
      %686 = vmatprep.subr.mxu0 0.0
      %687 = vmatpush1.msra.mxu0 0.0
      %688 = vmatprep.subr.mxu0 0.0
      %689 = vmatpush1.msra.mxu0 0.0
      %690 = vmatprep.subr.mxu0 0.0
      %691 = vmatpush1.msra.mxu0 0.0
      %692 = vmatprep.subr.mxu0 0.0
      %693 = vmatpush1.msra.mxu0 0.0
      %694 = vmatprep.subr.mxu0 0.0
      %695 = vmatpush1.msra.mxu0 0.0
      %696 = vmatprep.subr.mxu0 0.0
      %697 = vmatpush1.msra.mxu0 0.0
      %698 = vmatprep.subr.mxu0 0.0
      %699 = vmatpush1.msra.mxu0 0.0
      %700 = vmatprep.subr.mxu0 0.0
      %701 = vmatpush1.msra.mxu0 0.0
      %702 = vmatprep.subr.mxu0 0.0
      %703 = vmatpush1.msra.mxu0 0.0
      %704 = vmatprep.subr.mxu0 0.0
      %705 = vmatpush1.msra.mxu0 0.0
      %706 = vmatprep.subr.mxu0 0.0
      %707 = vmatpush1.msra.mxu0 0.0
      %708 = vmatprep.subr.mxu0 0.0
      %709 = vmatpush1.msra.mxu0 0.0
      %710 = vmatprep.subr.mxu0 0.0
      %711 = vmatpush1.msra.mxu0 0.0
      %712 = vmatprep.subr.mxu0 0.0
      %713 = vmatpush1.msra.mxu0 0.0
      %714 = vmatprep.subr.mxu0 0.0
      %715 = vmatpush1.msra.mxu0 0.0
      %716 = vmatprep.subr.mxu0 0.0
      %717 = vmatpush1.msra.mxu0 0.0
      %718 = vmatprep.subr.mxu0 0.0
      %719 = vmatpush1.msra.mxu0 0.0
      %720 = vmatprep.subr.mxu0 0.0
      %721 = vmatpush1.msra.mxu0 0.0
      %722 = vmatprep.subr.mxu0 0.0
      %723 = vmatpush1.msra.mxu0 0.0
      %724 = vmatprep.subr.mxu0 0.0
      %725 = vmatpush1.msra.mxu0 0.0
      %726 = vmatprep.subr.mxu0 0.0
      %727 = vmatpush1.msra.mxu0 0.0
      %728 = vmatprep.subr.mxu0 0.0
      %729 = vmatpush1.msra.mxu0 0.0
      %730 = vmatprep.subr.mxu0 0.0
      %731 = vmatpush1.msra.mxu0 0.0
      %732 = vmatprep.subr.mxu0 0.0
      %733 = vmatpush1.msra.mxu0 0.0
      %734 = vmatprep.mubr.f32.mxu0 0.0
      %735 = vmatmul.mubr.f32.gmra.mrb[0].mxu0 %v591
      %v736 = vpop.f32.mrb[0].mxu0
      %v737 = vadd.f32 0.0, %v736
      %v738 = vpop.f32.mrb[0].mxu0
      %739 = vdwg.mxu0
      %v740 = vadd.f32 %v502, %v666
      %v741 = vadd.f32 %v504, %v668
      %v742 = vadd.f32 %v573, %v737
      %s743 = scalar_lea.vmem %s0, 24
      %v744 = vld [vmem:[%s743] sm:$0xff]
      %745 = vrot.lane.b32.xlu0 %v252, 110
      %v746 = vpop.permute.xlu0 %745
      %747 = vrot.lane.b32.xlu0 %v257, 110
      %v748 = vpop.permute.xlu0 %747
      %749 = vrot.lane.b32.xlu0 %v253, 110
      %v750 = vpop.permute.xlu0 %749
      %751 = vrot.lane.b32.xlu0 %v254, 110
      %v752 = vpop.permute.xlu0 %751
      %vm753 = vcmask 900096
      %v754 = vsel %vm753, %v746, %v748
      %v755 = vsel %vm753, %v748, %v750
      %v756 = vsel %vm753, %v750, %v752
      %v758 = vsel %vm274, %v744, 0
      %v760 = vsel %vm278, %v754, 0
      %v762 = vsel %vm278, %v755, 0
      %v764 = vsel %vm278, %v756, 0
      %766 = vmatprep.subr.mxu0 %v762
      %767 = vmatpush1.msra.mxu0 %v760
      %768 = vmatprep.subr.mxu0 0.0
      %769 = vmatpush1.msra.mxu0 0.0
      %770 = vmatprep.subr.mxu0 0.0
      %771 = vmatpush1.msra.mxu0 0.0
      %772 = vmatprep.subr.mxu0 0.0
      %773 = vmatpush1.msra.mxu0 0.0
      %774 = vmatprep.subr.mxu0 0.0
      %775 = vmatpush1.msra.mxu0 0.0
      %776 = vmatprep.subr.mxu0 0.0
      %777 = vmatpush1.msra.mxu0 0.0
      %778 = vmatprep.subr.mxu0 0.0
      %779 = vmatpush1.msra.mxu0 0.0
      %780 = vmatprep.subr.mxu0 0.0
      %781 = vmatpush1.msra.mxu0 0.0
      %782 = vmatprep.subr.mxu0 0.0
      %783 = vmatpush1.msra.mxu0 0.0
      %784 = vmatprep.subr.mxu0 0.0
      %785 = vmatpush1.msra.mxu0 0.0
      %786 = vmatprep.subr.mxu0 0.0
      %787 = vmatpush1.msra.mxu0 0.0
      %788 = vmatprep.subr.mxu0 0.0
      %789 = vmatpush1.msra.mxu0 0.0
      %790 = vmatprep.subr.mxu0 0.0
      %791 = vmatpush1.msra.mxu0 0.0
      %792 = vmatprep.subr.mxu0 0.0
      %793 = vmatpush1.msra.mxu0 0.0
      %794 = vmatprep.subr.mxu0 0.0
      %795 = vmatpush1.msra.mxu0 0.0
      %796 = vmatprep.subr.mxu0 0.0
      %797 = vmatpush1.msra.mxu0 0.0
      %798 = vmatprep.subr.mxu0 0.0
      %799 = vmatpush1.msra.mxu0 0.0
      %800 = vmatprep.subr.mxu0 0.0
      %801 = vmatpush1.msra.mxu0 0.0
      %802 = vmatprep.subr.mxu0 0.0
      %803 = vmatpush1.msra.mxu0 0.0
      %804 = vmatprep.subr.mxu0 0.0
      %805 = vmatpush1.msra.mxu0 0.0
      %806 = vmatprep.subr.mxu0 0.0
      %807 = vmatpush1.msra.mxu0 0.0
      %808 = vmatprep.subr.mxu0 0.0
      %809 = vmatpush1.msra.mxu0 0.0
      %810 = vmatprep.subr.mxu0 0.0
      %811 = vmatpush1.msra.mxu0 0.0
      %812 = vmatprep.subr.mxu0 0.0
      %813 = vmatpush1.msra.mxu0 0.0
      %814 = vmatprep.subr.mxu0 0.0
      %815 = vmatpush1.msra.mxu0 0.0
      %816 = vmatprep.subr.mxu0 0.0
      %817 = vmatpush1.msra.mxu0 0.0
      %818 = vmatprep.subr.mxu0 0.0
      %819 = vmatpush1.msra.mxu0 0.0
      %820 = vmatprep.subr.mxu0 0.0
      %821 = vmatpush1.msra.mxu0 0.0
      %822 = vmatprep.subr.mxu0 0.0
      %823 = vmatpush1.msra.mxu0 0.0
      %824 = vmatprep.subr.mxu0 0.0
      %825 = vmatpush1.msra.mxu0 0.0
      %826 = vmatprep.subr.mxu0 0.0
      %827 = vmatpush1.msra.mxu0 0.0
      %828 = vmatprep.subr.mxu0 0.0
      %829 = vmatpush1.msra.mxu0 0.0
      %830 = vmatprep.mubr.f32.mxu0 0.0
      %831 = vmatmul.mubr.f32.gmra.mrb[0].mxu0 %v758
      %v832 = vpop.f32.mrb[0].mxu0
      %v833 = vadd.f32 0.0, %v832
      %v834 = vpop.f32.mrb[0].mxu0
      %v835 = vadd.f32 0.0, %v834
      %836 = vdwg.mxu0
      %837 = vmatprep.subr.mxu0 0.0
      %838 = vmatpush1.msra.mxu0 %v764
      %839 = vmatprep.subr.mxu0 0.0
      %840 = vmatpush1.msra.mxu0 0.0
      %841 = vmatprep.subr.mxu0 0.0
      %842 = vmatpush1.msra.mxu0 0.0
      %843 = vmatprep.subr.mxu0 0.0
      %844 = vmatpush1.msra.mxu0 0.0
      %845 = vmatprep.subr.mxu0 0.0
      %846 = vmatpush1.msra.mxu0 0.0
      %847 = vmatprep.subr.mxu0 0.0
      %848 = vmatpush1.msra.mxu0 0.0
      %849 = vmatprep.subr.mxu0 0.0
      %850 = vmatpush1.msra.mxu0 0.0
      %851 = vmatprep.subr.mxu0 0.0
      %852 = vmatpush1.msra.mxu0 0.0
      %853 = vmatprep.subr.mxu0 0.0
      %854 = vmatpush1.msra.mxu0 0.0
      %855 = vmatprep.subr.mxu0 0.0
      %856 = vmatpush1.msra.mxu0 0.0
      %857 = vmatprep.subr.mxu0 0.0
      %858 = vmatpush1.msra.mxu0 0.0
      %859 = vmatprep.subr.mxu0 0.0
      %860 = vmatpush1.msra.mxu0 0.0
      %861 = vmatprep.subr.mxu0 0.0
      %862 = vmatpush1.msra.mxu0 0.0
      %863 = vmatprep.subr.mxu0 0.0
      %864 = vmatpush1.msra.mxu0 0.0
      %865 = vmatprep.subr.mxu0 0.0
      %866 = vmatpush1.msra.mxu0 0.0
      %867 = vmatprep.subr.mxu0 0.0
      %868 = vmatpush1.msra.mxu0 0.0
      %869 = vmatprep.subr.mxu0 0.0
      %870 = vmatpush1.msra.mxu0 0.0
      %871 = vmatprep.subr.mxu0 0.0
      %872 = vmatpush1.msra.mxu0 0.0
      %873 = vmatprep.subr.mxu0 0.0
      %874 = vmatpush1.msra.mxu0 0.0
      %875 = vmatprep.subr.mxu0 0.0
      %876 = vmatpush1.msra.mxu0 0.0
      %877 = vmatprep.subr.mxu0 0.0
      %878 = vmatpush1.msra.mxu0 0.0
      %879 = vmatprep.subr.mxu0 0.0
      %880 = vmatpush1.msra.mxu0 0.0
      %881 = vmatprep.subr.mxu0 0.0
      %882 = vmatpush1.msra.mxu0 0.0
      %883 = vmatprep.subr.mxu0 0.0
      %884 = vmatpush1.msra.mxu0 0.0
      %885 = vmatprep.subr.mxu0 0.0
      %886 = vmatpush1.msra.mxu0 0.0
      %887 = vmatprep.subr.mxu0 0.0
      %888 = vmatpush1.msra.mxu0 0.0
      %889 = vmatprep.subr.mxu0 0.0
      %890 = vmatpush1.msra.mxu0 0.0
      %891 = vmatprep.subr.mxu0 0.0
      %892 = vmatpush1.msra.mxu0 0.0
      %893 = vmatprep.subr.mxu0 0.0
      %894 = vmatpush1.msra.mxu0 0.0
      %895 = vmatprep.subr.mxu0 0.0
      %896 = vmatpush1.msra.mxu0 0.0
      %897 = vmatprep.subr.mxu0 0.0
      %898 = vmatpush1.msra.mxu0 0.0
      %899 = vmatprep.subr.mxu0 0.0
      %900 = vmatpush1.msra.mxu0 0.0
      %901 = vmatprep.mubr.f32.mxu0 0.0
      %902 = vmatmul.mubr.f32.gmra.mrb[0].mxu0 %v758
      %v903 = vpop.f32.mrb[0].mxu0
      %v904 = vadd.f32 0.0, %v903
      %v905 = vpop.f32.mrb[0].mxu0
      %906 = vdwg.mxu0
      %v907 = vadd.f32 %v740, %v833
      %v908 = vadd.f32 %v741, %v835
      %v909 = vadd.f32 %v742, %v904
      %s910 = scalar_lea.vmem %s0, 32
      %v911 = vld [vmem:[%s910] sm:$0xff]
      %912 = vrot.lane.b32.xlu0 %v252, 109
      %v913 = vpop.permute.xlu0 %912
      %914 = vrot.lane.b32.xlu0 %v257, 109
      %v915 = vpop.permute.xlu0 %914
      %916 = vrot.lane.b32.xlu0 %v253, 109
      %v917 = vpop.permute.xlu0 %916
      %918 = vrot.lane.b32.xlu0 %v254, 109
      %v919 = vpop.permute.xlu0 %918
      %vm920 = vcmask 891904
      %v921 = vsel %vm920, %v913, %v915
      %v922 = vsel %vm920, %v915, %v917
      %v923 = vsel %vm920, %v917, %v919
      %v925 = vsel %vm274, %v911, 0
      %v927 = vsel %vm278, %v921, 0
      %v929 = vsel %vm278, %v922, 0
      %v931 = vsel %vm278, %v923, 0
      %933 = vmatprep.subr.mxu0 %v929
      %934 = vmatpush1.msra.mxu0 %v927
      %935 = vmatprep.subr.mxu0 0.0
      %936 = vmatpush1.msra.mxu0 0.0
      %937 = vmatprep.subr.mxu0 0.0
      %938 = vmatpush1.msra.mxu0 0.0
      %939 = vmatprep.subr.mxu0 0.0
      %940 = vmatpush1.msra.mxu0 0.0
      %941 = vmatprep.subr.mxu0 0.0
      %942 = vmatpush1.msra.mxu0 0.0
      %943 = vmatprep.subr.mxu0 0.0
      %944 = vmatpush1.msra.mxu0 0.0
      %945 = vmatprep.subr.mxu0 0.0
      %946 = vmatpush1.msra.mxu0 0.0
      %947 = vmatprep.subr.mxu0 0.0
      %948 = vmatpush1.msra.mxu0 0.0
      %949 = vmatprep.subr.mxu0 0.0
      %950 = vmatpush1.msra.mxu0 0.0
      %951 = vmatprep.subr.mxu0 0.0
      %952 = vmatpush1.msra.mxu0 0.0
      %953 = vmatprep.subr.mxu0 0.0
      %954 = vmatpush1.msra.mxu0 0.0
      %955 = vmatprep.subr.mxu0 0.0
      %956 = vmatpush1.msra.mxu0 0.0
      %957 = vmatprep.subr.mxu0 0.0
      %958 = vmatpush1.msra.mxu0 0.0
      %959 = vmatprep.subr.mxu0 0.0
      %960 = vmatpush1.msra.mxu0 0.0
      %961 = vmatprep.subr.mxu0 0.0
      %962 = vmatpush1.msra.mxu0 0.0
      %963 = vmatprep.subr.mxu0 0.0
      %964 = vmatpush1.msra.mxu0 0.0
      %965 = vmatprep.subr.mxu0 0.0
      %966 = vmatpush1.msra.mxu0 0.0
      %967 = vmatprep.subr.mxu0 0.0
      %968 = vmatpush1.msra.mxu0 0.0
      %969 = vmatprep.subr.mxu0 0.0
      %970 = vmatpush1.msra.mxu0 0.0
      %971 = vmatprep.subr.mxu0 0.0
      %972 = vmatpush1.msra.mxu0 0.0
      %973 = vmatprep.subr.mxu0 0.0
      %974 = vmatpush1.msra.mxu0 0.0
      %975 = vmatprep.subr.mxu0 0.0
      %976 = vmatpush1.msra.mxu0 0.0
      %977 = vmatprep.subr.mxu0 0.0
      %978 = vmatpush1.msra.mxu0 0.0
      %979 = vmatprep.subr.mxu0 0.0
      %980 = vmatpush1.msra.mxu0 0.0
      %981 = vmatprep.subr.mxu0 0.0
      %982 = vmatpush1.msra.mxu0 0.0
      %983 = vmatprep.subr.mxu0 0.0
      %984 = vmatpush1.msra.mxu0 0.0
      %985 = vmatprep.subr.mxu0 0.0
      %986 = vmatpush1.msra.mxu0 0.0
      %987 = vmatprep.subr.mxu0 0.0
      %988 = vmatpush1.msra.mxu0 0.0
      %989 = vmatprep.subr.mxu0 0.0
      %990 = vmatpush1.msra.mxu0 0.0
      %991 = vmatprep.subr.mxu0 0.0
      %992 = vmatpush1.msra.mxu0 0.0
      %993 = vmatprep.subr.mxu0 0.0
      %994 = vmatpush1.msra.mxu0 0.0
      %995 = vmatprep.subr.mxu0 0.0
      %996 = vmatpush1.msra.mxu0 0.0
      %997 = vmatprep.mubr.f32.mxu0 0.0
      %998 = vmatmul.mubr.f32.gmra.mrb[0].mxu0 %v925
      %v999 = vpop.f32.mrb[0].mxu0
      %v1000 = vadd.f32 0.0, %v999
      %v1001 = vpop.f32.mrb[0].mxu0
      %v1002 = vadd.f32 0.0, %v1001
      %1003 = vdwg.mxu0
      %1004 = vmatprep.subr.mxu0 0.0
      %1005 = vmatpush1.msra.mxu0 %v931
      %1006 = vmatprep.subr.mxu0 0.0
      %1007 = vmatpush1.msra.mxu0 0.0
      %1008 = vmatprep.subr.mxu0 0.0
      %1009 = vmatpush1.msra.mxu0 0.0
      %1010 = vmatprep.subr.mxu0 0.0
      %1011 = vmatpush1.msra.mxu0 0.0
      %1012 = vmatprep.subr.mxu0 0.0
      %1013 = vmatpush1.msra.mxu0 0.0
      %1014 = vmatprep.subr.mxu0 0.0
      %1015 = vmatpush1.msra.mxu0 0.0
      %1016 = vmatprep.subr.mxu0 0.0
      %1017 = vmatpush1.msra.mxu0 0.0
      %1018 = vmatprep.subr.mxu0 0.0
      %1019 = vmatpush1.msra.mxu0 0.0
      %1020 = vmatprep.subr.mxu0 0.0
      %1021 = vmatpush1.msra.mxu0 0.0
      %1022 = vmatprep.subr.mxu0 0.0
      %1023 = vmatpush1.msra.mxu0 0.0
      %1024 = vmatprep.subr.mxu0 0.0
      %1025 = vmatpush1.msra.mxu0 0.0
      %1026 = vmatprep.subr.mxu0 0.0
      %1027 = vmatpush1.msra.mxu0 0.0
      %1028 = vmatprep.subr.mxu0 0.0
      %1029 = vmatpush1.msra.mxu0 0.0
      %1030 = vmatprep.subr.mxu0 0.0
      %1031 = vmatpush1.msra.mxu0 0.0
      %1032 = vmatprep.subr.mxu0 0.0
      %1033 = vmatpush1.msra.mxu0 0.0
      %1034 = vmatprep.subr.mxu0 0.0
      %1035 = vmatpush1.msra.mxu0 0.0
      %1036 = vmatprep.subr.mxu0 0.0
      %1037 = vmatpush1.msra.mxu0 0.0
      %1038 = vmatprep.subr.mxu0 0.0
      %1039 = vmatpush1.msra.mxu0 0.0
      %1040 = vmatprep.subr.mxu0 0.0
      %1041 = vmatpush1.msra.mxu0 0.0
      %1042 = vmatprep.subr.mxu0 0.0
      %1043 = vmatpush1.msra.mxu0 0.0
      %1044 = vmatprep.subr.mxu0 0.0
      %1045 = vmatpush1.msra.mxu0 0.0
      %1046 = vmatprep.subr.mxu0 0.0
      %1047 = vmatpush1.msra.mxu0 0.0
      %1048 = vmatprep.subr.mxu0 0.0
      %1049 = vmatpush1.msra.mxu0 0.0
      %1050 = vmatprep.subr.mxu0 0.0
      %1051 = vmatpush1.msra.mxu0 0.0
      %1052 = vmatprep.subr.mxu0 0.0
      %1053 = vmatpush1.msra.mxu0 0.0
      %1054 = vmatprep.subr.mxu0 0.0
      %1055 = vmatpush1.msra.mxu0 0.0
      %1056 = vmatprep.subr.mxu0 0.0
      %1057 = vmatpush1.msra.mxu0 0.0
      %1058 = vmatprep.subr.mxu0 0.0
      %1059 = vmatpush1.msra.mxu0 0.0
      %1060 = vmatprep.subr.mxu0 0.0
      %1061 = vmatpush1.msra.mxu0 0.0
      %1062 = vmatprep.subr.mxu0 0.0
      %1063 = vmatpush1.msra.mxu0 0.0
      %1064 = vmatprep.subr.mxu0 0.0
      %1065 = vmatpush1.msra.mxu0 0.0
      %1066 = vmatprep.subr.mxu0 0.0
      %1067 = vmatpush1.msra.mxu0 0.0
      %1068 = vmatprep.mubr.f32.mxu0 0.0
      %1069 = vmatmul.mubr.f32.gmra.mrb[0].mxu0 %v925
      %v1070 = vpop.f32.mrb[0].mxu0
      %v1071 = vadd.f32 0.0, %v1070
      %v1072 = vpop.f32.mrb[0].mxu0
      %1073 = vdwg.mxu0
      %v1074 = vadd.f32 %v907, %v1000
      %v1075 = vadd.f32 %v908, %v1002
      %v1076 = vadd.f32 %v909, %v1071
      %s1077 = scalar_lea.vmem %s0, 40
      %v1078 = vld [vmem:[%s1077] sm:$0xff]
      %1079 = vrot.lane.b32.xlu0 %v252, 108
      %v1080 = vpop.permute.xlu0 %1079
      %1081 = vrot.lane.b32.xlu0 %v257, 108
      %v1082 = vpop.permute.xlu0 %1081
      %1083 = vrot.lane.b32.xlu0 %v253, 108
      %v1084 = vpop.permute.xlu0 %1083
      %1085 = vrot.lane.b32.xlu0 %v254, 108
      %v1086 = vpop.permute.xlu0 %1085
      %vm1087 = vcmask 883712
      %v1088 = vsel %vm1087, %v1080, %v1082
      %v1089 = vsel %vm1087, %v1082, %v1084
      %v1090 = vsel %vm1087, %v1084, %v1086
      %v1092 = vsel %vm274, %v1078, 0
      %v1094 = vsel %vm278, %v1088, 0
      %v1096 = vsel %vm278, %v1089, 0
      %v1098 = vsel %vm278, %v1090, 0
      %1100 = vmatprep.subr.mxu0 %v1096
      %1101 = vmatpush1.msra.mxu0 %v1094
      %1102 = vmatprep.subr.mxu0 0.0
      %1103 = vmatpush1.msra.mxu0 0.0
      %1104 = vmatprep.subr.mxu0 0.0
      %1105 = vmatpush1.msra.mxu0 0.0
      %1106 = vmatprep.subr.mxu0 0.0
      %1107 = vmatpush1.msra.mxu0 0.0
      %1108 = vmatprep.subr.mxu0 0.0
      %1109 = vmatpush1.msra.mxu0 0.0
      %1110 = vmatprep.subr.mxu0 0.0
      %1111 = vmatpush1.msra.mxu0 0.0
      %1112 = vmatprep.subr.mxu0 0.0
      %1113 = vmatpush1.msra.mxu0 0.0
      %1114 = vmatprep.subr.mxu0 0.0
      %1115 = vmatpush1.msra.mxu0 0.0
      %1116 = vmatprep.subr.mxu0 0.0
      %1117 = vmatpush1.msra.mxu0 0.0
      %1118 = vmatprep.subr.mxu0 0.0
      %1119 = vmatpush1.msra.mxu0 0.0
      %1120 = vmatprep.subr.mxu0 0.0
      %1121 = vmatpush1.msra.mxu0 0.0
      %1122 = vmatprep.subr.mxu0 0.0
      %1123 = vmatpush1.msra.mxu0 0.0
      %1124 = vmatprep.subr.mxu0 0.0
      %1125 = vmatpush1.msra.mxu0 0.0
      %1126 = vmatprep.subr.mxu0 0.0
      %1127 = vmatpush1.msra.mxu0 0.0
      %1128 = vmatprep.subr.mxu0 0.0
      %1129 = vmatpush1.msra.mxu0 0.0
      %1130 = vmatprep.subr.mxu0 0.0
      %1131 = vmatpush1.msra.mxu0 0.0
      %1132 = vmatprep.subr.mxu0 0.0
      %1133 = vmatpush1.msra.mxu0 0.0
      %1134 = vmatprep.subr.mxu0 0.0
      %1135 = vmatpush1.msra.mxu0 0.0
      %1136 = vmatprep.subr.mxu0 0.0
      %1137 = vmatpush1.msra.mxu0 0.0
      %1138 = vmatprep.subr.mxu0 0.0
      %1139 = vmatpush1.msra.mxu0 0.0
      %1140 = vmatprep.subr.mxu0 0.0
      %1141 = vmatpush1.msra.mxu0 0.0
      %1142 = vmatprep.subr.mxu0 0.0
      %1143 = vmatpush1.msra.mxu0 0.0
      %1144 = vmatprep.subr.mxu0 0.0
      %1145 = vmatpush1.msra.mxu0 0.0
      %1146 = vmatprep.subr.mxu0 0.0
      %1147 = vmatpush1.msra.mxu0 0.0
      %1148 = vmatprep.subr.mxu0 0.0
      %1149 = vmatpush1.msra.mxu0 0.0
      %1150 = vmatprep.subr.mxu0 0.0
      %1151 = vmatpush1.msra.mxu0 0.0
      %1152 = vmatprep.subr.mxu0 0.0
      %1153 = vmatpush1.msra.mxu0 0.0
      %1154 = vmatprep.subr.mxu0 0.0
      %1155 = vmatpush1.msra.mxu0 0.0
      %1156 = vmatprep.subr.mxu0 0.0
      %1157 = vmatpush1.msra.mxu0 0.0
      %1158 = vmatprep.subr.mxu0 0.0
      %1159 = vmatpush1.msra.mxu0 0.0
      %1160 = vmatprep.subr.mxu0 0.0
      %1161 = vmatpush1.msra.mxu0 0.0
      %1162 = vmatprep.subr.mxu0 0.0
      %1163 = vmatpush1.msra.mxu0 0.0
      %1164 = vmatprep.mubr.f32.mxu0 0.0
      %1165 = vmatmul.mubr.f32.gmra.mrb[0].mxu0 %v1092
      %v1166 = vpop.f32.mrb[0].mxu0
      %v1167 = vadd.f32 0.0, %v1166
      %v1168 = vpop.f32.mrb[0].mxu0
      %v1169 = vadd.f32 0.0, %v1168
      %1170 = vdwg.mxu0
      %1171 = vmatprep.subr.mxu0 0.0
      %1172 = vmatpush1.msra.mxu0 %v1098
      %1173 = vmatprep.subr.mxu0 0.0
      %1174 = vmatpush1.msra.mxu0 0.0
      %1175 = vmatprep.subr.mxu0 0.0
      %1176 = vmatpush1.msra.mxu0 0.0
      %1177 = vmatprep.subr.mxu0 0.0
      %1178 = vmatpush1.msra.mxu0 0.0
      %1179 = vmatprep.subr.mxu0 0.0
      %1180 = vmatpush1.msra.mxu0 0.0
      %1181 = vmatprep.subr.mxu0 0.0
      %1182 = vmatpush1.msra.mxu0 0.0
      %1183 = vmatprep.subr.mxu0 0.0
      %1184 = vmatpush1.msra.mxu0 0.0
      %1185 = vmatprep.subr.mxu0 0.0
      %1186 = vmatpush1.msra.mxu0 0.0
      %1187 = vmatprep.subr.mxu0 0.0
      %1188 = vmatpush1.msra.mxu0 0.0
      %1189 = vmatprep.subr.mxu0 0.0
      %1190 = vmatpush1.msra.mxu0 0.0
      %1191 = vmatprep.subr.mxu0 0.0
      %1192 = vmatpush1.msra.mxu0 0.0
      %1193 = vmatprep.subr.mxu0 0.0
      %1194 = vmatpush1.msra.mxu0 0.0
      %1195 = vmatprep.subr.mxu0 0.0
      %1196 = vmatpush1.msra.mxu0 0.0
      %1197 = vmatprep.subr.mxu0 0.0
      %1198 = vmatpush1.msra.mxu0 0.0
      %1199 = vmatprep.subr.mxu0 0.0
      %1200 = vmatpush1.msra.mxu0 0.0
      %1201 = vmatprep.subr.mxu0 0.0
      %1202 = vmatpush1.msra.mxu0 0.0
      %1203 = vmatprep.subr.mxu0 0.0
      %1204 = vmatpush1.msra.mxu0 0.0
      %1205 = vmatprep.subr.mxu0 0.0
      %1206 = vmatpush1.msra.mxu0 0.0
      %1207 = vmatprep.subr.mxu0 0.0
      %1208 = vmatpush1.msra.mxu0 0.0
      %1209 = vmatprep.subr.mxu0 0.0
      %1210 = vmatpush1.msra.mxu0 0.0
      %1211 = vmatprep.subr.mxu0 0.0
      %1212 = vmatpush1.msra.mxu0 0.0
      %1213 = vmatprep.subr.mxu0 0.0
      %1214 = vmatpush1.msra.mxu0 0.0
      %1215 = vmatprep.subr.mxu0 0.0
      %1216 = vmatpush1.msra.mxu0 0.0
      %1217 = vmatprep.subr.mxu0 0.0
      %1218 = vmatpush1.msra.mxu0 0.0
      %1219 = vmatprep.subr.mxu0 0.0
      %1220 = vmatpush1.msra.mxu0 0.0
      %1221 = vmatprep.subr.mxu0 0.0
      %1222 = vmatpush1.msra.mxu0 0.0
      %1223 = vmatprep.subr.mxu0 0.0
      %1224 = vmatpush1.msra.mxu0 0.0
      %1225 = vmatprep.subr.mxu0 0.0
      %1226 = vmatpush1.msra.mxu0 0.0
      %1227 = vmatprep.subr.mxu0 0.0
      %1228 = vmatpush1.msra.mxu0 0.0
      %1229 = vmatprep.subr.mxu0 0.0
      %1230 = vmatpush1.msra.mxu0 0.0
      %1231 = vmatprep.subr.mxu0 0.0
      %1232 = vmatpush1.msra.mxu0 0.0
      %1233 = vmatprep.subr.mxu0 0.0
      %1234 = vmatpush1.msra.mxu0 0.0
      %1235 = vmatprep.mubr.f32.mxu0 0.0
      %1236 = vmatmul.mubr.f32.gmra.mrb[0].mxu0 %v1092
      %v1237 = vpop.f32.mrb[0].mxu0
      %v1238 = vadd.f32 0.0, %v1237
      %v1239 = vpop.f32.mrb[0].mxu0
      %1240 = vdwg.mxu0
      %v1241 = vadd.f32 %v1074, %v1167
      %v1242 = vadd.f32 %v1075, %v1169
      %v1243 = vadd.f32 %v1076, %v1238
      %s1244 = scalar_lea.vmem %s0, 48
      %v1245 = vld [vmem:[%s1244] sm:$0xff]
      %1246 = vrot.lane.b32.xlu0 %v252, 92
      %v1247 = vpop.permute.xlu0 %1246
      %1248 = vrot.lane.b32.xlu0 %v257, 92
      %v1249 = vpop.permute.xlu0 %1248
      %1250 = vrot.lane.b32.xlu0 %v253, 92
      %v1251 = vpop.permute.xlu0 %1250
      %1252 = vrot.lane.b32.xlu0 %v254, 92
      %v1253 = vpop.permute.xlu0 %1252
      %vm1254 = vcmask 752640
      %v1255 = vsel %vm1254, %v1247, %v1249
      %v1256 = vsel %vm1254, %v1249, %v1251
      %v1257 = vsel %vm1254, %v1251, %v1253
      %v1259 = vsel %vm274, %v1245, 0
      %v1261 = vsel %vm278, %v1255, 0
      %v1263 = vsel %vm278, %v1256, 0
      %v1265 = vsel %vm278, %v1257, 0
      %1267 = vmatprep.subr.mxu0 %v1263
      %1268 = vmatpush1.msra.mxu0 %v1261
      %1269 = vmatprep.subr.mxu0 0.0
      %1270 = vmatpush1.msra.mxu0 0.0
      %1271 = vmatprep.subr.mxu0 0.0
      %1272 = vmatpush1.msra.mxu0 0.0
      %1273 = vmatprep.subr.mxu0 0.0
      %1274 = vmatpush1.msra.mxu0 0.0
      %1275 = vmatprep.subr.mxu0 0.0
      %1276 = vmatpush1.msra.mxu0 0.0
      %1277 = vmatprep.subr.mxu0 0.0
      %1278 = vmatpush1.msra.mxu0 0.0
      %1279 = vmatprep.subr.mxu0 0.0
      %1280 = vmatpush1.msra.mxu0 0.0
      %1281 = vmatprep.subr.mxu0 0.0
      %1282 = vmatpush1.msra.mxu0 0.0
      %1283 = vmatprep.subr.mxu0 0.0
      %1284 = vmatpush1.msra.mxu0 0.0
      %1285 = vmatprep.subr.mxu0 0.0
      %1286 = vmatpush1.msra.mxu0 0.0
      %1287 = vmatprep.subr.mxu0 0.0
      %1288 = vmatpush1.msra.mxu0 0.0
      %1289 = vmatprep.subr.mxu0 0.0
      %1290 = vmatpush1.msra.mxu0 0.0
      %1291 = vmatprep.subr.mxu0 0.0
      %1292 = vmatpush1.msra.mxu0 0.0
      %1293 = vmatprep.subr.mxu0 0.0
      %1294 = vmatpush1.msra.mxu0 0.0
      %1295 = vmatprep.subr.mxu0 0.0
      %1296 = vmatpush1.msra.mxu0 0.0
      %1297 = vmatprep.subr.mxu0 0.0
      %1298 = vmatpush1.msra.mxu0 0.0
      %1299 = vmatprep.subr.mxu0 0.0
      %1300 = vmatpush1.msra.mxu0 0.0
      %1301 = vmatprep.subr.mxu0 0.0
      %1302 = vmatpush1.msra.mxu0 0.0
      %1303 = vmatprep.subr.mxu0 0.0
      %1304 = vmatpush1.msra.mxu0 0.0
      %1305 = vmatprep.subr.mxu0 0.0
      %1306 = vmatpush1.msra.mxu0 0.0
      %1307 = vmatprep.subr.mxu0 0.0
      %1308 = vmatpush1.msra.mxu0 0.0
      %1309 = vmatprep.subr.mxu0 0.0
      %1310 = vmatpush1.msra.mxu0 0.0
      %1311 = vmatprep.subr.mxu0 0.0
      %1312 = vmatpush1.msra.mxu0 0.0
      %1313 = vmatprep.subr.mxu0 0.0
      %1314 = vmatpush1.msra.mxu0 0.0
      %1315 = vmatprep.subr.mxu0 0.0
      %1316 = vmatpush1.msra.mxu0 0.0
      %1317 = vmatprep.subr.mxu0 0.0
      %1318 = vmatpush1.msra.mxu0 0.0
      %1319 = vmatprep.subr.mxu0 0.0
      %1320 = vmatpush1.msra.mxu0 0.0
      %1321 = vmatprep.subr.mxu0 0.0
      %1322 = vmatpush1.msra.mxu0 0.0
      %1323 = vmatprep.subr.mxu0 0.0
      %1324 = vmatpush1.msra.mxu0 0.0
      %1325 = vmatprep.subr.mxu0 0.0
      %1326 = vmatpush1.msra.mxu0 0.0
      %1327 = vmatprep.subr.mxu0 0.0
      %1328 = vmatpush1.msra.mxu0 0.0
      %1329 = vmatprep.subr.mxu0 0.0
      %1330 = vmatpush1.msra.mxu0 0.0
      %1331 = vmatprep.mubr.f32.mxu0 0.0
      %1332 = vmatmul.mubr.f32.gmra.mrb[0].mxu0 %v1259
      %v1333 = vpop.f32.mrb[0].mxu0
      %v1334 = vadd.f32 0.0, %v1333
      %v1335 = vpop.f32.mrb[0].mxu0
      %v1336 = vadd.f32 0.0, %v1335
      %1337 = vdwg.mxu0
      %1338 = vmatprep.subr.mxu0 0.0
      %1339 = vmatpush1.msra.mxu0 %v1265
      %1340 = vmatprep.subr.mxu0 0.0
      %1341 = vmatpush1.msra.mxu0 0.0
      %1342 = vmatprep.subr.mxu0 0.0
      %1343 = vmatpush1.msra.mxu0 0.0
      %1344 = vmatprep.subr.mxu0 0.0
      %1345 = vmatpush1.msra.mxu0 0.0
      %1346 = vmatprep.subr.mxu0 0.0
      %1347 = vmatpush1.msra.mxu0 0.0
      %1348 = vmatprep.subr.mxu0 0.0
      %1349 = vmatpush1.msra.mxu0 0.0
      %1350 = vmatprep.subr.mxu0 0.0
      %1351 = vmatpush1.msra.mxu0 0.0
      %1352 = vmatprep.subr.mxu0 0.0
      %1353 = vmatpush1.msra.mxu0 0.0
      %1354 = vmatprep.subr.mxu0 0.0
      %1355 = vmatpush1.msra.mxu0 0.0
      %1356 = vmatprep.subr.mxu0 0.0
      %1357 = vmatpush1.msra.mxu0 0.0
      %1358 = vmatprep.subr.mxu0 0.0
      %1359 = vmatpush1.msra.mxu0 0.0
      %1360 = vmatprep.subr.mxu0 0.0
      %1361 = vmatpush1.msra.mxu0 0.0
      %1362 = vmatprep.subr.mxu0 0.0
      %1363 = vmatpush1.msra.mxu0 0.0
      %1364 = vmatprep.subr.mxu0 0.0
      %1365 = vmatpush1.msra.mxu0 0.0
      %1366 = vmatprep.subr.mxu0 0.0
      %1367 = vmatpush1.msra.mxu0 0.0
      %1368 = vmatprep.subr.mxu0 0.0
      %1369 = vmatpush1.msra.mxu0 0.0
      %1370 = vmatprep.subr.mxu0 0.0
      %1371 = vmatpush1.msra.mxu0 0.0
      %1372 = vmatprep.subr.mxu0 0.0
      %1373 = vmatpush1.msra.mxu0 0.0
      %1374 = vmatprep.subr.mxu0 0.0
      %1375 = vmatpush1.msra.mxu0 0.0
      %1376 = vmatprep.subr.mxu0 0.0
      %1377 = vmatpush1.msra.mxu0 0.0
      %1378 = vmatprep.subr.mxu0 0.0
      %1379 = vmatpush1.msra.mxu0 0.0
      %1380 = vmatprep.subr.mxu0 0.0
      %1381 = vmatpush1.msra.mxu0 0.0
      %1382 = vmatprep.subr.mxu0 0.0
      %1383 = vmatpush1.msra.mxu0 0.0
      %1384 = vmatprep.subr.mxu0 0.0
      %1385 = vmatpush1.msra.mxu0 0.0
      %1386 = vmatprep.subr.mxu0 0.0
      %1387 = vmatpush1.msra.mxu0 0.0
      %1388 = vmatprep.subr.mxu0 0.0
      %1389 = vmatpush1.msra.mxu0 0.0
      %1390 = vmatprep.subr.mxu0 0.0
      %1391 = vmatpush1.msra.mxu0 0.0
      %1392 = vmatprep.subr.mxu0 0.0
      %1393 = vmatpush1.msra.mxu0 0.0
      %1394 = vmatprep.subr.mxu0 0.0
      %1395 = vmatpush1.msra.mxu0 0.0
      %1396 = vmatprep.subr.mxu0 0.0
      %1397 = vmatpush1.msra.mxu0 0.0
      %1398 = vmatprep.subr.mxu0 0.0
      %1399 = vmatpush1.msra.mxu0 0.0
      %1400 = vmatprep.subr.mxu0 0.0
      %1401 = vmatpush1.msra.mxu0 0.0
      %1402 = vmatprep.mubr.f32.mxu0 0.0
      %1403 = vmatmul.mubr.f32.gmra.mrb[0].mxu0 %v1259
      %v1404 = vpop.f32.mrb[0].mxu0
      %v1405 = vadd.f32 0.0, %v1404
      %v1406 = vpop.f32.mrb[0].mxu0
      %1407 = vdwg.mxu0
      %v1408 = vadd.f32 %v1241, %v1334
      %v1409 = vadd.f32 %v1242, %v1336
      %v1410 = vadd.f32 %v1243, %v1405
      %s1411 = scalar_lea.vmem %s0, 56
      %v1412 = vld [vmem:[%s1411] sm:$0xff]
      %1413 = vrot.lane.b32.xlu0 %v252, 91
      %v1414 = vpop.permute.xlu0 %1413
      %1415 = vrot.lane.b32.xlu0 %v257, 91
      %v1416 = vpop.permute.xlu0 %1415
      %1417 = vrot.lane.b32.xlu0 %v253, 91
      %v1418 = vpop.permute.xlu0 %1417
      %1419 = vrot.lane.b32.xlu0 %v254, 91
      %v1420 = vpop.permute.xlu0 %1419
      %vm1421 = vcmask 744448
      %v1422 = vsel %vm1421, %v1414, %v1416
      %v1423 = vsel %vm1421, %v1416, %v1418
      %v1424 = vsel %vm1421, %v1418, %v1420
      %v1426 = vsel %vm274, %v1412, 0
      %v1428 = vsel %vm278, %v1422, 0
      %v1430 = vsel %vm278, %v1423, 0
      %v1432 = vsel %vm278, %v1424, 0
      %1434 = vmatprep.subr.mxu0 %v1430
      %1435 = vmatpush1.msra.mxu0 %v1428
      %1436 = vmatprep.subr.mxu0 0.0
      %1437 = vmatpush1.msra.mxu0 0.0
      %1438 = vmatprep.subr.mxu0 0.0
      %1439 = vmatpush1.msra.mxu0 0.0
      %1440 = vmatprep.subr.mxu0 0.0
      %1441 = vmatpush1.msra.mxu0 0.0
      %1442 = vmatprep.subr.mxu0 0.0
      %1443 = vmatpush1.msra.mxu0 0.0
      %1444 = vmatprep.subr.mxu0 0.0
      %1445 = vmatpush1.msra.mxu0 0.0
      %1446 = vmatprep.subr.mxu0 0.0
      %1447 = vmatpush1.msra.mxu0 0.0
      %1448 = vmatprep.subr.mxu0 0.0
      %1449 = vmatpush1.msra.mxu0 0.0
      %1450 = vmatprep.subr.mxu0 0.0
      %1451 = vmatpush1.msra.mxu0 0.0
      %1452 = vmatprep.subr.mxu0 0.0
      %1453 = vmatpush1.msra.mxu0 0.0
      %1454 = vmatprep.subr.mxu0 0.0
      %1455 = vmatpush1.msra.mxu0 0.0
      %1456 = vmatprep.subr.mxu0 0.0
      %1457 = vmatpush1.msra.mxu0 0.0
      %1458 = vmatprep.subr.mxu0 0.0
      %1459 = vmatpush1.msra.mxu0 0.0
      %1460 = vmatprep.subr.mxu0 0.0
      %1461 = vmatpush1.msra.mxu0 0.0
      %1462 = vmatprep.subr.mxu0 0.0
      %1463 = vmatpush1.msra.mxu0 0.0
      %1464 = vmatprep.subr.mxu0 0.0
      %1465 = vmatpush1.msra.mxu0 0.0
      %1466 = vmatprep.subr.mxu0 0.0
      %1467 = vmatpush1.msra.mxu0 0.0
      %1468 = vmatprep.subr.mxu0 0.0
      %1469 = vmatpush1.msra.mxu0 0.0
      %1470 = vmatprep.subr.mxu0 0.0
      %1471 = vmatpush1.msra.mxu0 0.0
      %1472 = vmatprep.subr.mxu0 0.0
      %1473 = vmatpush1.msra.mxu0 0.0
      %1474 = vmatprep.subr.mxu0 0.0
      %1475 = vmatpush1.msra.mxu0 0.0
      %1476 = vmatprep.subr.mxu0 0.0
      %1477 = vmatpush1.msra.mxu0 0.0
      %1478 = vmatprep.subr.mxu0 0.0
      %1479 = vmatpush1.msra.mxu0 0.0
      %1480 = vmatprep.subr.mxu0 0.0
      %1481 = vmatpush1.msra.mxu0 0.0
      %1482 = vmatprep.subr.mxu0 0.0
      %1483 = vmatpush1.msra.mxu0 0.0
      %1484 = vmatprep.subr.mxu0 0.0
      %1485 = vmatpush1.msra.mxu0 0.0
      %1486 = vmatprep.subr.mxu0 0.0
      %1487 = vmatpush1.msra.mxu0 0.0
      %1488 = vmatprep.subr.mxu0 0.0
      %1489 = vmatpush1.msra.mxu0 0.0
      %1490 = vmatprep.subr.mxu0 0.0
      %1491 = vmatpush1.msra.mxu0 0.0
      %1492 = vmatprep.subr.mxu0 0.0
      %1493 = vmatpush1.msra.mxu0 0.0
      %1494 = vmatprep.subr.mxu0 0.0
      %1495 = vmatpush1.msra.mxu0 0.0
      %1496 = vmatprep.subr.mxu0 0.0
      %1497 = vmatpush1.msra.mxu0 0.0
      %1498 = vmatprep.mubr.f32.mxu0 0.0
      %1499 = vmatmul.mubr.f32.gmra.mrb[0].mxu0 %v1426
      %v1500 = vpop.f32.mrb[0].mxu0
      %v1501 = vadd.f32 0.0, %v1500
      %v1502 = vpop.f32.mrb[0].mxu0
      %v1503 = vadd.f32 0.0, %v1502
      %1504 = vdwg.mxu0
      %1505 = vmatprep.subr.mxu0 0.0
      %1506 = vmatpush1.msra.mxu0 %v1432
      %1507 = vmatprep.subr.mxu0 0.0
      %1508 = vmatpush1.msra.mxu0 0.0
      %1509 = vmatprep.subr.mxu0 0.0
      %1510 = vmatpush1.msra.mxu0 0.0
      %1511 = vmatprep.subr.mxu0 0.0
      %1512 = vmatpush1.msra.mxu0 0.0
      %1513 = vmatprep.subr.mxu0 0.0
      %1514 = vmatpush1.msra.mxu0 0.0
      %1515 = vmatprep.subr.mxu0 0.0
      %1516 = vmatpush1.msra.mxu0 0.0
      %1517 = vmatprep.subr.mxu0 0.0
      %1518 = vmatpush1.msra.mxu0 0.0
      %1519 = vmatprep.subr.mxu0 0.0
      %1520 = vmatpush1.msra.mxu0 0.0
      %1521 = vmatprep.subr.mxu0 0.0
      %1522 = vmatpush1.msra.mxu0 0.0
      %1523 = vmatprep.subr.mxu0 0.0
      %1524 = vmatpush1.msra.mxu0 0.0
      %1525 = vmatprep.subr.mxu0 0.0
      %1526 = vmatpush1.msra.mxu0 0.0
      %1527 = vmatprep.subr.mxu0 0.0
      %1528 = vmatpush1.msra.mxu0 0.0
      %1529 = vmatprep.subr.mxu0 0.0
      %1530 = vmatpush1.msra.mxu0 0.0
      %1531 = vmatprep.subr.mxu0 0.0
      %1532 = vmatpush1.msra.mxu0 0.0
      %1533 = vmatprep.subr.mxu0 0.0
      %1534 = vmatpush1.msra.mxu0 0.0
      %1535 = vmatprep.subr.mxu0 0.0
      %1536 = vmatpush1.msra.mxu0 0.0
      %1537 = vmatprep.subr.mxu0 0.0
      %1538 = vmatpush1.msra.mxu0 0.0
      %1539 = vmatprep.subr.mxu0 0.0
      %1540 = vmatpush1.msra.mxu0 0.0
      %1541 = vmatprep.subr.mxu0 0.0
      %1542 = vmatpush1.msra.mxu0 0.0
      %1543 = vmatprep.subr.mxu0 0.0
      %1544 = vmatpush1.msra.mxu0 0.0
      %1545 = vmatprep.subr.mxu0 0.0
      %1546 = vmatpush1.msra.mxu0 0.0
      %1547 = vmatprep.subr.mxu0 0.0
      %1548 = vmatpush1.msra.mxu0 0.0
      %1549 = vmatprep.subr.mxu0 0.0
      %1550 = vmatpush1.msra.mxu0 0.0
      %1551 = vmatprep.subr.mxu0 0.0
      %1552 = vmatpush1.msra.mxu0 0.0
      %1553 = vmatprep.subr.mxu0 0.0
      %1554 = vmatpush1.msra.mxu0 0.0
      %1555 = vmatprep.subr.mxu0 0.0
      %1556 = vmatpush1.msra.mxu0 0.0
      %1557 = vmatprep.subr.mxu0 0.0
      %1558 = vmatpush1.msra.mxu0 0.0
      %1559 = vmatprep.subr.mxu0 0.0
      %1560 = vmatpush1.msra.mxu0 0.0
      %1561 = vmatprep.subr.mxu0 0.0
      %1562 = vmatpush1.msra.mxu0 0.0
      %1563 = vmatprep.subr.mxu0 0.0
      %1564 = vmatpush1.msra.mxu0 0.0
      %1565 = vmatprep.subr.mxu0 0.0
      %1566 = vmatpush1.msra.mxu0 0.0
      %1567 = vmatprep.subr.mxu0 0.0
      %1568 = vmatpush1.msra.mxu0 0.0
      %1569 = vmatprep.mubr.f32.mxu0 0.0
      %1570 = vmatmul.mubr.f32.gmra.mrb[0].mxu0 %v1426
      %v1571 = vpop.f32.mrb[0].mxu0
      %v1572 = vadd.f32 0.0, %v1571
      %v1573 = vpop.f32.mrb[0].mxu0
      %1574 = vdwg.mxu0
      %v1575 = vadd.f32 %v1408, %v1501
      %v1576 = vadd.f32 %v1409, %v1503
      %v1577 = vadd.f32 %v1410, %v1572
      %s1578 = scalar_lea.vmem %s0, 64
      %v1579 = vld [vmem:[%s1578] sm:$0xff]
      %1580 = vrot.lane.b32.xlu0 %v252, 90
      %v1581 = vpop.permute.xlu0 %1580
      %1582 = vrot.lane.b32.xlu0 %v257, 90
      %v1583 = vpop.permute.xlu0 %1582
      %1584 = vrot.lane.b32.xlu0 %v253, 90
      %v1585 = vpop.permute.xlu0 %1584
      %1586 = vrot.lane.b32.xlu0 %v254, 90
      %v1587 = vpop.permute.xlu0 %1586
      %vm1588 = vcmask 736256
      %v1589 = vsel %vm1588, %v1581, %v1583
      %v1590 = vsel %vm1588, %v1583, %v1585
      %v1591 = vsel %vm1588, %v1585, %v1587
      %v1593 = vsel %vm274, %v1579, 0
      %v1595 = vsel %vm278, %v1589, 0
      %v1597 = vsel %vm278, %v1590, 0
      %v1599 = vsel %vm278, %v1591, 0
      %1601 = vmatprep.subr.mxu0 %v1597
      %1602 = vmatpush1.msra.mxu0 %v1595
      %1603 = vmatprep.subr.mxu0 0.0
      %1604 = vmatpush1.msra.mxu0 0.0
      %1605 = vmatprep.subr.mxu0 0.0
      %1606 = vmatpush1.msra.mxu0 0.0
      %1607 = vmatprep.subr.mxu0 0.0
      %1608 = vmatpush1.msra.mxu0 0.0
      %1609 = vmatprep.subr.mxu0 0.0
      %1610 = vmatpush1.msra.mxu0 0.0
      %1611 = vmatprep.subr.mxu0 0.0
      %1612 = vmatpush1.msra.mxu0 0.0
      %1613 = vmatprep.subr.mxu0 0.0
      %1614 = vmatpush1.msra.mxu0 0.0
      %1615 = vmatprep.subr.mxu0 0.0
      %1616 = vmatpush1.msra.mxu0 0.0
      %1617 = vmatprep.subr.mxu0 0.0
      %1618 = vmatpush1.msra.mxu0 0.0
      %1619 = vmatprep.subr.mxu0 0.0
      %1620 = vmatpush1.msra.mxu0 0.0
      %1621 = vmatprep.subr.mxu0 0.0
      %1622 = vmatpush1.msra.mxu0 0.0
      %1623 = vmatprep.subr.mxu0 0.0
      %1624 = vmatpush1.msra.mxu0 0.0
      %1625 = vmatprep.subr.mxu0 0.0
      %1626 = vmatpush1.msra.mxu0 0.0
      %1627 = vmatprep.subr.mxu0 0.0
      %1628 = vmatpush1.msra.mxu0 0.0
      %1629 = vmatprep.subr.mxu0 0.0
      %1630 = vmatpush1.msra.mxu0 0.0
      %1631 = vmatprep.subr.mxu0 0.0
      %1632 = vmatpush1.msra.mxu0 0.0
      %1633 = vmatprep.subr.mxu0 0.0
      %1634 = vmatpush1.msra.mxu0 0.0
      %1635 = vmatprep.subr.mxu0 0.0
      %1636 = vmatpush1.msra.mxu0 0.0
      %1637 = vmatprep.subr.mxu0 0.0
      %1638 = vmatpush1.msra.mxu0 0.0
      %1639 = vmatprep.subr.mxu0 0.0
      %1640 = vmatpush1.msra.mxu0 0.0
      %1641 = vmatprep.subr.mxu0 0.0
      %1642 = vmatpush1.msra.mxu0 0.0
      %1643 = vmatprep.subr.mxu0 0.0
      %1644 = vmatpush1.msra.mxu0 0.0
      %1645 = vmatprep.subr.mxu0 0.0
      %1646 = vmatpush1.msra.mxu0 0.0
      %1647 = vmatprep.subr.mxu0 0.0
      %1648 = vmatpush1.msra.mxu0 0.0
      %1649 = vmatprep.subr.mxu0 0.0
      %1650 = vmatpush1.msra.mxu0 0.0
      %1651 = vmatprep.subr.mxu0 0.0
      %1652 = vmatpush1.msra.mxu0 0.0
      %1653 = vmatprep.subr.mxu0 0.0
      %1654 = vmatpush1.msra.mxu0 0.0
      %1655 = vmatprep.subr.mxu0 0.0
      %1656 = vmatpush1.msra.mxu0 0.0
      %1657 = vmatprep.subr.mxu0 0.0
      %1658 = vmatpush1.msra.mxu0 0.0
      %1659 = vmatprep.subr.mxu0 0.0
      %1660 = vmatpush1.msra.mxu0 0.0
      %1661 = vmatprep.subr.mxu0 0.0
      %1662 = vmatpush1.msra.mxu0 0.0
      %1663 = vmatprep.subr.mxu0 0.0
      %1664 = vmatpush1.msra.mxu0 0.0
      %1665 = vmatprep.mubr.f32.mxu0 0.0
      %1666 = vmatmul.mubr.f32.gmra.mrb[0].mxu0 %v1593
      %v1667 = vpop.f32.mrb[0].mxu0
      %v1668 = vadd.f32 0.0, %v1667
      %v1669 = vpop.f32.mrb[0].mxu0
      %v1670 = vadd.f32 0.0, %v1669
      %1671 = vdwg.mxu0
      %1672 = vmatprep.subr.mxu0 0.0
      %1673 = vmatpush1.msra.mxu0 %v1599
      %1674 = vmatprep.subr.mxu0 0.0
      %1675 = vmatpush1.msra.mxu0 0.0
      %1676 = vmatprep.subr.mxu0 0.0
      %1677 = vmatpush1.msra.mxu0 0.0
      %1678 = vmatprep.subr.mxu0 0.0
      %1679 = vmatpush1.msra.mxu0 0.0
      %1680 = vmatprep.subr.mxu0 0.0
      %1681 = vmatpush1.msra.mxu0 0.0
      %1682 = vmatprep.subr.mxu0 0.0
      %1683 = vmatpush1.msra.mxu0 0.0
      %1684 = vmatprep.subr.mxu0 0.0
      %1685 = vmatpush1.msra.mxu0 0.0
      %1686 = vmatprep.subr.mxu0 0.0
      %1687 = vmatpush1.msra.mxu0 0.0
      %1688 = vmatprep.subr.mxu0 0.0
      %1689 = vmatpush1.msra.mxu0 0.0
      %1690 = vmatprep.subr.mxu0 0.0
      %1691 = vmatpush1.msra.mxu0 0.0
      %1692 = vmatprep.subr.mxu0 0.0
      %1693 = vmatpush1.msra.mxu0 0.0
      %1694 = vmatprep.subr.mxu0 0.0
      %1695 = vmatpush1.msra.mxu0 0.0
      %1696 = vmatprep.subr.mxu0 0.0
      %1697 = vmatpush1.msra.mxu0 0.0
      %1698 = vmatprep.subr.mxu0 0.0
      %1699 = vmatpush1.msra.mxu0 0.0
      %1700 = vmatprep.subr.mxu0 0.0
      %1701 = vmatpush1.msra.mxu0 0.0
      %1702 = vmatprep.subr.mxu0 0.0
      %1703 = vmatpush1.msra.mxu0 0.0
      %1704 = vmatprep.subr.mxu0 0.0
      %1705 = vmatpush1.msra.mxu0 0.0
      %1706 = vmatprep.subr.mxu0 0.0
      %1707 = vmatpush1.msra.mxu0 0.0
      %1708 = vmatprep.subr.mxu0 0.0
      %1709 = vmatpush1.msra.mxu0 0.0
      %1710 = vmatprep.subr.mxu0 0.0
      %1711 = vmatpush1.msra.mxu0 0.0
      %1712 = vmatprep.subr.mxu0 0.0
      %1713 = vmatpush1.msra.mxu0 0.0
      %1714 = vmatprep.subr.mxu0 0.0
      %1715 = vmatpush1.msra.mxu0 0.0
      %1716 = vmatprep.subr.mxu0 0.0
      %1717 = vmatpush1.msra.mxu0 0.0
      %1718 = vmatprep.subr.mxu0 0.0
      %1719 = vmatpush1.msra.mxu0 0.0
      %1720 = vmatprep.subr.mxu0 0.0
      %1721 = vmatpush1.msra.mxu0 0.0
      %1722 = vmatprep.subr.mxu0 0.0
      %1723 = vmatpush1.msra.mxu0 0.0
      %1724 = vmatprep.subr.mxu0 0.0
      %1725 = vmatpush1.msra.mxu0 0.0
      %1726 = vmatprep.subr.mxu0 0.0
      %1727 = vmatpush1.msra.mxu0 0.0
      %1728 = vmatprep.subr.mxu0 0.0
      %1729 = vmatpush1.msra.mxu0 0.0
      %1730 = vmatprep.subr.mxu0 0.0
      %1731 = vmatpush1.msra.mxu0 0.0
      %1732 = vmatprep.subr.mxu0 0.0
      %1733 = vmatpush1.msra.mxu0 0.0
      %1734 = vmatprep.subr.mxu0 0.0
      %1735 = vmatpush1.msra.mxu0 0.0
      %1736 = vmatprep.mubr.f32.mxu0 0.0
      %1737 = vmatmul.mubr.f32.gmra.mrb[0].mxu0 %v1593
      %v1738 = vpop.f32.mrb[0].mxu0
      %v1739 = vadd.f32 0.0, %v1738
      %v1740 = vpop.f32.mrb[0].mxu0
      %1741 = vdwg.mxu0
      %v1742 = vadd.f32 %v1575, %v1668
      %v1743 = vadd.f32 %v1576, %v1670
      %v1744 = vadd.f32 %v1577, %v1739
      %v1745 = vld [vmem:[%s3] sm:$0xff]
      %1747 = vset.pattern.permute.xlu0 0
      %1748 = vperm.xlu0 %1747, %v1745
      %v1749 = vpop.permute.xlu0 %1748
      %v1751 = vadd.f32 %v1742, %v1749
      %v1752 = vadd.f32 %v1743, %v1749
      %v1753 = vadd.f32 %v1744, %v1749
      %v1754 = vmax.f32 %v1751, 0.0
      %v1755 = vmax.f32 %v1752, 0.0
      %v1756 = vmax.f32 %v1753, 0.0
      %1757 = vst [vmem:[%s250] sm:$0xff] %v1754
      %1758 = vst [vmem:[%s250 + $0x8] sm:$0xff] %v1755
      %1759 = vst [vmem:[%s250 + $0x10] sm:$0xff] %v1756
      %s1760 = smul.u32 3, %s15
      %p1761 = scmp.lt.s32.totalorder %s1760, 5
      %s1762 = scalar_select %p1761, %s1760, 5
      %s1763 = smul.addr %s1762, 8
      %s1764 = scalar_lea.vmem %s4, %s1763
      // Predicated region
      $region37: #{basic_conv2d.1} parent=35 // pred_check
        %p1765 = pneg %p131
      $region38: #{basic_conv2d.1} parent=35 // pred_check_branch
        %1767 = sbr.rel (%p1765) target = $region40
      $region39: #{basic_conv2d.1} parent=35 // pred_region
        %s1768 = smul.u32 3, %s15
      $region40: #{basic_conv2d.1} parent=35 // pred_fallthru
        _
    $region36: #{basic_conv2d.1} parent=5 // pred_fallthru
      _
    %p1769 = scmp.le.s32.totalorder 2, %s10
    // Predicated region
    $region41: #{basic_conv2d.1} parent=5 // pred_check
      %p1770 = pneg %p1769
    $region42: #{basic_conv2d.1} parent=5 // pred_check_branch
      %1772 = sbr.rel (%p1770) target = $region44
    $region43: #{basic_conv2d.1} parent=5 // pred_region
      %s1773 = ssub.s32 %s10, 2
      // Predicated region
      $region45: #{basic_conv2d.1} parent=43 // pred_check
        %p1774 = pneg %p137
      $region46: #{basic_conv2d.1} parent=43 // pred_check_branch
        %1776 = sbr.rel (%p1774) target = $region48
      $region47: #{basic_conv2d.1} parent=43 // pred_region
        %s1777 = smul.u32 3, %s16
        %p1778 = scmp.lt.s32.totalorder %s1777, 5
        %s1779 = scalar_select %p1778, %s1777, 5
        %s1780 = smul.addr %s1779, 8
        %s1781 = scalar_lea.vmem %s4, %s1780
      $region48: #{basic_conv2d.1} parent=43 // pred_fallthru
        _
    $region44: #{basic_conv2d.1} parent=5 // pred_fallthru
      _
  $region6: #{basic_conv2d.1} parent=0 // loop_footer
    %s14 = sadd.s32 1, %s10
  $region7: #{basic_conv2d.1} parent=0 // loop_footer_branch
    %9 = sbr.rel target = $region3
  $region8: #{basic_conv2d.1} parent=0 // loop_exit
    _

</llo_original>
